<compile_context>
chip_gen: v6e
topology: v6e:2x2x1
jax: 0.10.0
libtpu: 0.0.40
codegen_flags: <defaults>
</compile_context>

<pallas_src>
import jax
import jax.numpy as jnp
from jax import lax
from jax.experimental import pallas as pl
from jax.experimental.pallas import tpu as pltpu

IN_FEATURES = 512
OUT_FEATURES = 1024
NUM_GROUPS = 32
GROUP_SIZE = OUT_FEATURES // NUM_GROUPS     # 32
EPS = 1e-5

TN = 512                                    # feature tile: multiple of 128 and of GROUP_SIZE
GROUPS_PER_TILE = TN // GROUP_SIZE          # 16 (every group lives entirely inside one tile)


def fused_kernel(x_ref, w_ref, cb_ref, g_ref, gt_ref, o_ref):
    # ---- Linear on the MXU: (B, K) @ (K, TN) + linear-bias (row 0 of cb) ----
    y = jnp.dot(x_ref[...], w_ref[...], preferred_element_type=jnp.float32)
    y = y + cb_ref[0:1, :]                      # (B, TN) + (1, TN)

    # ---- Swish, then extra bias add (row 1 of cb): swish(y) + bias ----
    s = y * jax.nn.sigmoid(y) + cb_ref[1:2, :]  # (B, TN)

    # ---- GroupNorm (no affine): per-group stats via small MXU matmuls ----
    # g_ref:  (TN, GPT) indicator scaled by 1/GROUP_SIZE  -> group means
    # gt_ref: (GPT, TN) 0/1 indicator                     -> broadcast back
    Gs = g_ref[...]
    Gt = gt_ref[...]

    mean_g = jnp.dot(s, Gs, preferred_element_type=jnp.float32)        # (B, GPT)
    mean = jnp.dot(mean_g, Gt, preferred_element_type=jnp.float32)     # (B, TN)
    diff = s - mean
    var_g = jnp.dot(diff * diff, Gs, preferred_element_type=jnp.float32)  # (B, GPT)
    inv_std_g = lax.rsqrt(var_g + EPS)                                  # EUP
    inv_std = jnp.dot(inv_std_g, Gt, preferred_element_type=jnp.float32)  # (B, TN)

    # one full-tile, lane-dense (multiple-of-128) store
    o_ref[...] = diff * inv_std


def _indicator_matrices():
    """Group-indicator matrices, built once on host/XLA side (hoisted from kernel)."""
    feat = lax.broadcasted_iota(jnp.int32, (TN, GROUPS_PER_TILE), 0) // GROUP_SIZE
    grp = lax.broadcasted_iota(jnp.int32, (TN, GROUPS_PER_TILE), 1)
    g_scaled = (feat == grp).astype(jnp.float32) * (1.0 / GROUP_SIZE)   # (TN, GPT)

    grp_t = lax.broadcasted_iota(jnp.int32, (GROUPS_PER_TILE, TN), 0)
    feat_t = lax.broadcasted_iota(jnp.int32, (GROUPS_PER_TILE, TN), 1) // GROUP_SIZE
    gt = (grp_t == feat_t).astype(jnp.float32)                          # (GPT, TN)
    return g_scaled, gt


def fused_forward(x, w_t, linear_bias, bias):
    """x: (B, IN_FEATURES) f32; w_t: (IN_FEATURES, OUT_FEATURES) f32;
    linear_bias, bias: (1, OUT_FEATURES) f32."""
    B = x.shape[0]
    combined_bias = jnp.concatenate([linear_bias, bias], axis=0)   # (2, OUT_FEATURES)
    g_scaled, gt = _indicator_matrices()

    return pl.pallas_call(
        fused_kernel,
        out_shape=jax.ShapeDtypeStruct((B, OUT_FEATURES), jnp.float32),
        grid_spec=pltpu.PrefetchScalarGridSpec(
            num_scalar_prefetch=0,
            grid=(OUT_FEATURES // TN,),                            # 2 steps
            in_specs=[
                pl.BlockSpec((B, IN_FEATURES), lambda j: (0, 0)),
                pl.BlockSpec((IN_FEATURES, TN), lambda j: (0, j)),
                pl.BlockSpec((2, TN), lambda j: (0, j)),
                pl.BlockSpec((TN, GROUPS_PER_TILE), lambda j: (0, 0)),
                pl.BlockSpec((GROUPS_PER_TILE, TN), lambda j: (0, 0)),
            ],
            out_specs=pl.BlockSpec((B, TN), lambda j: (0, j)),
        ),
        compiler_params=pltpu.CompilerParams(
            dimension_semantics=("parallel",)),
    )(x, w_t, combined_bias, g_scaled, gt)


def reference_forward(x, w_t, linear_bias, bias):
    y = x @ w_t + linear_bias
    s = y * jax.nn.sigmoid(y) + bias
    s3 = s.reshape(x.shape[0], NUM_GROUPS, GROUP_SIZE)
    mean = s3.mean(-1, keepdims=True)
    var = ((s3 - mean) ** 2).mean(-1, keepdims=True)
    return ((s3 - mean) / jnp.sqrt(var + EPS)).reshape(x.shape[0], OUT_FEATURES)


if __name__ == "__main__":
    key = jax.random.PRNGKey(0)
    k1, k2, k3, k4 = jax.random.split(key, 4)

    B = 8  # small batch

    # Deterministic parameter init (PyTorch-Linear-style uniform bounds).
    bound = 1.0 / (IN_FEATURES ** 0.5)
    w = jax.random.uniform(k1, (OUT_FEATURES, IN_FEATURES), jnp.float32,
                           minval=-bound, maxval=bound)
    linear_bias = jax.random.uniform(k2, (1, OUT_FEATURES), jnp.float32,
                                     minval=-bound, maxval=bound)
    bias = jax.random.normal(k3, (1, OUT_FEATURES), jnp.float32)  # self.bias ~ randn
    x = jax.random.normal(k4, (B, IN_FEATURES), jnp.float32)

    w_t = w.T  # (IN_FEATURES, OUT_FEATURES)

    out = fused_forward(x, w_t, linear_bias, bias)
    out = jax.block_until_ready(out)

    ref = reference_forward(x, w_t, linear_bias, bias)
    assert out.shape == (B, OUT_FEATURES)
    assert jnp.allclose(out, ref, atol=2e-4, rtol=2e-4), \
        f"max err {jnp.max(jnp.abs(out - ref))}"

    print("KERNEL_OK")
</pallas_src>

<mosaic_0001>
module attributes {stable_mosaic.version = 11 : i64} {
  func.func @fused_kernel(%arg0: i32, %arg1: memref<8x512xf32, #tpu.memory_space<vmem>>, %arg2: memref<512x512xf32, #tpu.memory_space<vmem>>, %arg3: memref<2x512xf32, #tpu.memory_space<vmem>>, %arg4: memref<512x16xf32, #tpu.memory_space<vmem>>, %arg5: memref<16x512xf32, #tpu.memory_space<vmem>>, %arg6: memref<8x512xf32, #tpu.memory_space<vmem>>) attributes {dimension_semantics = [#tpu.dimension_semantics<parallel>], iteration_bounds = array<i64: 2>, scalar_prefetch = 0 : i64, scratch_operands = 0 : i64, tpu.core_type = #tpu.core_type<tc>, window_params = [{pipeline_mode = #tpu.pipeline_mode<synchronous>, transform_indices = @transform_0, window_bounds = array<i64: 8, 512>}, {transform_indices = @transform_1, window_bounds = array<i64: 512, 512>}, {transform_indices = @transform_2, window_bounds = array<i64: 2, 512>}, {pipeline_mode = #tpu.pipeline_mode<synchronous>, transform_indices = @transform_3, window_bounds = array<i64: 512, 16>}, {pipeline_mode = #tpu.pipeline_mode<synchronous>, transform_indices = @transform_4, window_bounds = array<i64: 16, 512>}, {transform_indices = @transform_5, window_bounds = array<i64: 8, 512>}]} {
    %c0 = arith.constant 0 : index
    %c0_0 = arith.constant 0 : index
    %0 = vector.load %arg1[%c0, %c0_0] : memref<8x512xf32, #tpu.memory_space<vmem>>, vector<8x512xf32>
    %c0_1 = arith.constant 0 : index
    %c0_2 = arith.constant 0 : index
    %1 = vector.load %arg2[%c0_1, %c0_2] : memref<512x512xf32, #tpu.memory_space<vmem>>, vector<512x512xf32>
    %cst = arith.constant dense<0.000000e+00> : vector<8x512xf32>
    %2 = tpu.matmul %0, %1, %cst {dimension_numbers = #tpu.dot_dimension_numbers<[1], [0], [0], [1], [0, 0, 1, 1], [], []>} : vector<8x512xf32>, vector<512x512xf32>, vector<8x512xf32> -> vector<8x512xf32>
    %c0_3 = arith.constant 0 : index
    %c0_4 = arith.constant 0 : index
    %3 = vector.load %arg3[%c0_3, %c0_4] : memref<2x512xf32, #tpu.memory_space<vmem>>, vector<1x512xf32>
    %4 = vector.broadcast %3 : vector<1x512xf32> to vector<8x512xf32>
    %5 = arith.addf %2, %4 : vector<8x512xf32>
    %6 = arith.negf %5 : vector<8x512xf32>
    %7 = math.exp %6 : vector<8x512xf32>
    %cst_5 = arith.constant 1.000000e+00 : f32
    %8 = vector.broadcast %cst_5 : f32 to vector<8x512xf32>
    %9 = arith.addf %8, %7 : vector<8x512xf32>
    %10 = arith.divf %8, %9 : vector<8x512xf32>
    %11 = arith.mulf %5, %10 : vector<8x512xf32>
    %c1 = arith.constant 1 : index
    %c0_6 = arith.constant 0 : index
    %12 = vector.load %arg3[%c1, %c0_6] : memref<2x512xf32, #tpu.memory_space<vmem>>, vector<1x512xf32>
    %13 = vector.broadcast %12 : vector<1x512xf32> to vector<8x512xf32>
    %14 = arith.addf %11, %13 : vector<8x512xf32>
    %c0_7 = arith.constant 0 : index
    %c0_8 = arith.constant 0 : index
    %15 = vector.load %arg4[%c0_7, %c0_8] : memref<512x16xf32, #tpu.memory_space<vmem>>, vector<512x16xf32>
    %c0_9 = arith.constant 0 : index
    %c0_10 = arith.constant 0 : index
    %16 = vector.load %arg5[%c0_9, %c0_10] : memref<16x512xf32, #tpu.memory_space<vmem>>, vector<16x512xf32>
    %cst_11 = arith.constant dense<0.000000e+00> : vector<8x16xf32>
    %17 = tpu.matmul %14, %15, %cst_11 {dimension_numbers = #tpu.dot_dimension_numbers<[1], [0], [0], [1], [0, 0, 1, 1], [], []>} : vector<8x512xf32>, vector<512x16xf32>, vector<8x16xf32> -> vector<8x16xf32>
    %cst_12 = arith.constant dense<0.000000e+00> : vector<8x512xf32>
    %18 = tpu.matmul %17, %16, %cst_12 {dimension_numbers = #tpu.dot_dimension_numbers<[1], [0], [0], [1], [0, 0, 1, 1], [], []>} : vector<8x16xf32>, vector<16x512xf32>, vector<8x512xf32> -> vector<8x512xf32>
    %19 = arith.subf %14, %18 : vector<8x512xf32>
    %20 = arith.mulf %19, %19 : vector<8x512xf32>
    %cst_13 = arith.constant dense<0.000000e+00> : vector<8x16xf32>
    %21 = tpu.matmul %20, %15, %cst_13 {dimension_numbers = #tpu.dot_dimension_numbers<[1], [0], [0], [1], [0, 0, 1, 1], [], []>} : vector<8x512xf32>, vector<512x16xf32>, vector<8x16xf32> -> vector<8x16xf32>
    %cst_14 = arith.constant 9.99999974E-6 : f32
    %22 = vector.broadcast %cst_14 : f32 to vector<8x16xf32>
    %23 = arith.addf %21, %22 : vector<8x16xf32>
    %24 = math.rsqrt %23 : vector<8x16xf32>
    %cst_15 = arith.constant dense<0.000000e+00> : vector<8x512xf32>
    %25 = tpu.matmul %24, %16, %cst_15 {dimension_numbers = #tpu.dot_dimension_numbers<[1], [0], [0], [1], [0, 0, 1, 1], [], []>} : vector<8x16xf32>, vector<16x512xf32>, vector<8x512xf32> -> vector<8x512xf32>
    %26 = arith.mulf %19, %25 : vector<8x512xf32>
    %c0_16 = arith.constant 0 : index
    %c0_17 = arith.constant 0 : index
    %27 = vector.load %arg6[%c0_16, %c0_17] : memref<8x512xf32, #tpu.memory_space<vmem>>, vector<8x512xf32>
    tpu.vector_store %arg6[%c0_16, %c0_17], %26 {strides = array<i32>} : memref<8x512xf32, #tpu.memory_space<vmem>>, vector<8x512xf32>,
    return
  }
  func.func @transform_0(%arg0: i32) -> (i32, i32) {
    %c0_i32 = arith.constant 0 : i32
    %c0_i32_0 = arith.constant 0 : i32
    %c0_i32_1 = arith.constant 0 : i32
    return %c0_i32, %c0_i32_0 : i32, i32
  }
  func.func @transform_1(%arg0: i32) -> (i32, i32) {
    %c0_i32 = arith.constant 0 : i32
    %c0_i32_0 = arith.constant 0 : i32
    return %c0_i32, %arg0 : i32, i32
  }
  func.func @transform_2(%arg0: i32) -> (i32, i32) {
    %c0_i32 = arith.constant 0 : i32
    %c0_i32_0 = arith.constant 0 : i32
    return %c0_i32, %arg0 : i32, i32
  }
  func.func @transform_3(%arg0: i32) -> (i32, i32) {
    %c0_i32 = arith.constant 0 : i32
    %c0_i32_0 = arith.constant 0 : i32
    %c0_i32_1 = arith.constant 0 : i32
    return %c0_i32, %c0_i32_0 : i32, i32
  }
  func.func @transform_4(%arg0: i32) -> (i32, i32) {
    %c0_i32 = arith.constant 0 : i32
    %c0_i32_0 = arith.constant 0 : i32
    %c0_i32_1 = arith.constant 0 : i32
    return %c0_i32, %c0_i32_0 : i32, i32
  }
  func.func @transform_5(%arg0: i32) -> (i32, i32) {
    %c0_i32 = arith.constant 0 : i32
    %c0_i32_0 = arith.constant 0 : i32
    return %c0_i32, %arg0 : i32, i32
  }
}

</mosaic_0001>

<llo_original>
// kernel: tpu_custom_call.1
$region0: #{tpu_custom_call.1}
  #allocation0 [shape = 'u32[]', space=smem, size = 0x4, offset = 0x4, fixed_abs, tag = 'smem constant byte address 0x4 - core index']
  #allocation1 [shape = 'u32[144,128]{1,0:T(1,128)}', space=vmem, size = 0x12000, scoped, tag = 'internal scratch']
  %s0 = inlined_call_operand.hbm [shape: f32[8,512], index: 0, kind: input, shape index: {}]
  %s1 = inlined_call_operand.hbm [shape: f32[512,1024], index: 1, kind: input, shape index: {}]
  %s2 = inlined_call_operand.hbm [shape: f32[2,1024], index: 2, kind: input, shape index: {}]
  %s3 = inlined_call_operand.vmem [shape: f32[512,16], index: 3, kind: input, shape index: {}]
  %s4 = inlined_call_operand.hbm [shape: f32[16,512], index: 4, kind: input, shape index: {}]
  %s5 = inlined_call_operand.hbm [shape: f32[8,1024], index: 5, kind: output, shape index: {}]
  %s6 = sld [smem:[#allocation0]]
  $region69: #{tpu_custom_call.1} parent=0
    _
  %s8 = ssub.s32 1, %s6
  %s9 = scalar_select 0, %s8, %s6
  $region1: #{tpu_custom_call.1} parent=0
    #allocation2 [shape = 'u8[16384]{0}', space=vmem, size = 0x4000, scoped, tag = 'input window, operand 0, single buffered']
    #allocation3 [shape = 's32[2]{0}', space=sflag, size = 0x8, scoped, tag = 'scoped memory for tpu_custom_call.1']
    #allocation4 [shape = 's32[2]{0}', space=sflag, size = 0x8, scoped, tag = 'scoped memory for tpu_custom_call.1']
    #allocation5 [shape = 'u8[2097152]{0}', space=vmem, size = 0x200000, scoped, tag = 'input window, operand 1']
    #allocation6 [shape = 's32[2]{0}', space=sflag, size = 0x8, scoped, tag = 'scoped memory for tpu_custom_call.1']
    #allocation7 [shape = 'u8[8192]{0}', space=vmem, size = 0x2000, scoped, tag = 'input window, operand 2']
    #allocation8 [shape = 'u8[32768]{0}', space=vmem, size = 0x8000, scoped, tag = 'input window, operand 4, single buffered']
    #allocation9 [shape = 's32[1]{0}', space=sflag, size = 0x4, scoped, tag = 'scoped memory for tpu_custom_call.1']
    #allocation10 [shape = 'u8[32768]{0}', space=vmem, size = 0x8000, scoped, tag = 'output window, operand 0']
    %10 = vsyncpa [#allocation3], 0
    %11 = vsyncpa [#allocation6], 0
    %s12 = scalar_lea.sflag [#allocation6], 1
    %13 = vsyncpa %s12, 0
    %14 = vsyncpa [#allocation9], 0
    %15 = vsyncpa [#allocation4], 0
    %s16 = scalar_lea.sflag [#allocation4], 1
    %17 = vsyncpa %s16, 0
    loop: start=0, step=1, limit=4
    $region2: #{tpu_custom_call.1} parent=1 // loop_pre_header
      _
    $region3: #{tpu_custom_call.1} parent=1 // loop_header
      %s19 = sphi 0, %s23
      %p20 = scmp.ge.s32.totalorder %s19, 4
      %s27 = sphi 0, %s27
      %s29 = sphi 0, %s27
      %s30 = sphi 0, %s29
      %s44 = sphi 0, %s30
      %s50 = sphi 0, %s52
      %s53 = sphi 0, %s50
      %s54 = sphi 0, %s53
      %s70 = sphi 0, %s54
      %s76 = sphi 0, %s78
      %s79 = sphi 0, %s76
      %s80 = sphi 0, %s79
      %s96 = sphi 0, %s80
      %s100 = sphi 0, %s100
      %s102 = sphi 0, %s100
      %s103 = sphi 0, %s102
      %s117 = sphi 0, %s103
      %s121 = sphi 0, %s121
      %s123 = sphi 0, %s121
      %s124 = sphi 0, %s123
      %s138 = sphi 0, %s124
      %s144 = sphi 0, %s146
      %s147 = sphi 0, %s144
      %s148 = sphi 0, %s147
      %s164 = sphi 0, %s148
    $region4: #{tpu_custom_call.1} parent=1 // loop_header_branch
      %22 = sbr.rel (%p20) target = $region8
    $region5: #{tpu_custom_call.1} parent=1 // loop_body
      %s24 = ssub.s32 %s19, 1
      %s25 = ssub.s32 %s19, 2
      %s26 = sadd.s32 %s19, 1
      %s28 = sadd.s32 %s27, 1
      %p31 = scmp.eq.s32.totalorder %s19, 1
      %p32 = scmp.ne.s32.totalorder %s27, %s29
      %p33 = scmp.eq.s32.totalorder %s19, 0
      %p34 = por %p32, %p33
      %p35 = scmp.ne.s32.totalorder %s27, %s29
      %p36 = scmp.eq.s32.totalorder %s24, 1
      %p37 = por %p35, %p36
      %p38 = scmp.ne.s32.totalorder %s29, %s30
      %p39 = scmp.eq.s32.totalorder %s24, 0
      %p40 = por %p38, %p39
      %p41 = scmp.ne.s32.totalorder %s29, %s30
      %p42 = scmp.eq.s32.totalorder %s25, 1
      %p43 = por %p41, %p42
      %p45 = scmp.ne.s32.totalorder %s30, %s44
      %p46 = scmp.eq.s32.totalorder %s25, 0
      %p47 = por %p45, %p46
      %s48 = ssub.s32 %s19, %s26
      %p49 = scmp.eq.s32.totalorder %s48, 0
      %s51 = sadd.s32 %s50, 1
      %s52 = scalar_select %p49, %s50, %s51
      %p55 = pneg %p49
      %p56 = scmp.eq.s32.totalorder %s19, 1
      %p57 = por %p55, %p56
      %p58 = scmp.ne.s32.totalorder %s50, %s53
      %p59 = scmp.eq.s32.totalorder %s19, 0
      %p60 = por %p58, %p59
      %p61 = scmp.ne.s32.totalorder %s50, %s53
      %p62 = scmp.eq.s32.totalorder %s24, 1
      %p63 = por %p61, %p62
      %p64 = scmp.ne.s32.totalorder %s53, %s54
      %p65 = scmp.eq.s32.totalorder %s24, 0
      %p66 = por %p64, %p65
      %p67 = scmp.ne.s32.totalorder %s53, %s54
      %p68 = scmp.eq.s32.totalorder %s25, 1
      %p69 = por %p67, %p68
      %p71 = scmp.ne.s32.totalorder %s54, %s70
      %p72 = scmp.eq.s32.totalorder %s25, 0
      %p73 = por %p71, %p72
      %s74 = ssub.s32 %s19, %s26
      %p75 = scmp.eq.s32.totalorder %s74, 0
      %s77 = sadd.s32 %s76, 1
      %s78 = scalar_select %p75, %s76, %s77
      %p81 = pneg %p75
      %p82 = scmp.eq.s32.totalorder %s19, 1
      %p83 = por %p81, %p82
      %p84 = scmp.ne.s32.totalorder %s76, %s79
      %p85 = scmp.eq.s32.totalorder %s19, 0
      %p86 = por %p84, %p85
      %p87 = scmp.ne.s32.totalorder %s76, %s79
      %p88 = scmp.eq.s32.totalorder %s24, 1
      %p89 = por %p87, %p88
      %p90 = scmp.ne.s32.totalorder %s79, %s80
      %p91 = scmp.eq.s32.totalorder %s24, 0
      %p92 = por %p90, %p91
      %p93 = scmp.ne.s32.totalorder %s79, %s80
      %p94 = scmp.eq.s32.totalorder %s25, 1
      %p95 = por %p93, %p94
      %p97 = scmp.ne.s32.totalorder %s80, %s96
      %p98 = scmp.eq.s32.totalorder %s25, 0
      %p99 = por %p97, %p98
      %s101 = sadd.s32 %s100, 1
      %p104 = scmp.eq.s32.totalorder %s19, 1
      %p105 = scmp.ne.s32.totalorder %s100, %s102
      %p106 = scmp.eq.s32.totalorder %s19, 0
      %p107 = por %p105, %p106
      %p108 = scmp.ne.s32.totalorder %s100, %s102
      %p109 = scmp.eq.s32.totalorder %s24, 1
      %p110 = por %p108, %p109
      %p111 = scmp.ne.s32.totalorder %s102, %s103
      %p112 = scmp.eq.s32.totalorder %s24, 0
      %p113 = por %p111, %p112
      %p114 = scmp.ne.s32.totalorder %s102, %s103
      %p115 = scmp.eq.s32.totalorder %s25, 1
      %p116 = por %p114, %p115
      %p118 = scmp.ne.s32.totalorder %s103, %s117
      %p119 = scmp.eq.s32.totalorder %s25, 0
      %p120 = por %p118, %p119
      %s122 = sadd.s32 %s121, 1
      %p125 = scmp.eq.s32.totalorder %s19, 1
      %p126 = scmp.ne.s32.totalorder %s121, %s123
      %p127 = scmp.eq.s32.totalorder %s19, 0
      %p128 = por %p126, %p127
      %p129 = scmp.ne.s32.totalorder %s121, %s123
      %p130 = scmp.eq.s32.totalorder %s24, 1
      %p131 = por %p129, %p130
      %p132 = scmp.ne.s32.totalorder %s123, %s124
      %p133 = scmp.eq.s32.totalorder %s24, 0
      %p134 = por %p132, %p133
      %p135 = scmp.ne.s32.totalorder %s123, %s124
      %p136 = scmp.eq.s32.totalorder %s25, 1
      %p137 = por %p135, %p136
      %p139 = scmp.ne.s32.totalorder %s124, %s138
      %p140 = scmp.eq.s32.totalorder %s25, 0
      %p141 = por %p139, %p140
      %s142 = ssub.s32 %s19, %s26
      %p143 = scmp.eq.s32.totalorder %s142, 0
      %s145 = sadd.s32 %s144, 1
      %s146 = scalar_select %p143, %s144, %s145
      %p149 = pneg %p143
      %p150 = scmp.eq.s32.totalorder %s19, 1
      %p151 = por %p149, %p150
      %p152 = scmp.ne.s32.totalorder %s144, %s147
      %p153 = scmp.eq.s32.totalorder %s19, 0
      %p154 = por %p152, %p153
      %p155 = scmp.ne.s32.totalorder %s144, %s147
      %p156 = scmp.eq.s32.totalorder %s24, 1
      %p157 = por %p155, %p156
      %p158 = scmp.ne.s32.totalorder %s147, %s148
      %p159 = scmp.eq.s32.totalorder %s24, 0
      %p160 = por %p158, %p159
      %p161 = scmp.ne.s32.totalorder %s147, %s148
      %p162 = scmp.eq.s32.totalorder %s25, 1
      %p163 = por %p161, %p162
      %p165 = scmp.ne.s32.totalorder %s148, %s164
      %p166 = scmp.eq.s32.totalorder %s25, 0
      %p167 = por %p165, %p166
      %p168 = scmp.le.s32.totalorder 1, %s19
      %p169 = scmp.lt.s32.totalorder %s19, 3
      %p170 = pnand %p168, %p169
      %p171 = pneg %p170
      // Predicated region
      $region9: #{tpu_custom_call.1} parent=5 // pred_check
        _
      $region10: #{tpu_custom_call.1} parent=5 // pred_check_branch
        %173 = sbr.rel (%p170) target = $region12
      $region11: #{tpu_custom_call.1} parent=5 // pred_region
        %s174 = ssub.s32 %s19, 1
        // Predicated region
        $region13: #{tpu_custom_call.1} parent=11 // pred_check
          %p175 = pneg %p40
        $region14: #{tpu_custom_call.1} parent=11 // pred_check_branch
          %177 = sbr.rel (%p175) target = $region16
        $region15: #{tpu_custom_call.1} parent=11 // pred_region
          %s179 = ssub.s32 512, 512
          %180 = vsyncadd [#allocation3], %s179
          %s182 = sshll.u32 [#allocation2], 4
          %s183 = int_to_ptr.vmem [resolvable:$true] %s182
          %185 = dma.hbm_to_vmem [thread:$0]  %s0, 512, %s183, [#allocation3]
        $region16: #{tpu_custom_call.1} parent=11 // pred_fallthru
          _
        // Predicated region
        $region17: #{tpu_custom_call.1} parent=11 // pred_check
          %p186 = pneg %p113
        $region18: #{tpu_custom_call.1} parent=11 // pred_check_branch
          %188 = sbr.rel (%p186) target = $region20
        $region19: #{tpu_custom_call.1} parent=11 // pred_region
          _
        $region20: #{tpu_custom_call.1} parent=11 // pred_fallthru
          _
        // Predicated region
        $region21: #{tpu_custom_call.1} parent=11 // pred_check
          %p189 = pneg %p134
        $region22: #{tpu_custom_call.1} parent=11 // pred_check_branch
          %191 = sbr.rel (%p189) target = $region24
        $region23: #{tpu_custom_call.1} parent=11 // pred_region
          %s193 = ssub.s32 1024, 1024
          %194 = vsyncadd [#allocation9], %s193
          %s195 = sshll.u32 [#allocation8], 4
          %s196 = int_to_ptr.vmem [resolvable:$true] %s195
          %201 = dma.hbm_to_vmem [thread:$0]  %s4, 1024, %s196, [#allocation9], 512, 512, 32
        $region24: #{tpu_custom_call.1} parent=11 // pred_fallthru
          _
      $region12: #{tpu_custom_call.1} parent=5 // pred_fallthru
        _
      %p202 = scmp.lt.s32.totalorder %s19, 2
      // Predicated region
      $region25: #{tpu_custom_call.1} parent=5 // pred_check
        %p203 = pneg %p202
      $region26: #{tpu_custom_call.1} parent=5 // pred_check_branch
        %205 = sbr.rel (%p203) target = $region28
      $region27: #{tpu_custom_call.1} parent=5 // pred_region
        // Predicated region
        $region29: #{tpu_custom_call.1} parent=27 // pred_check
          %p206 = pneg %p60
        $region30: #{tpu_custom_call.1} parent=27 // pred_check_branch
          %208 = sbr.rel (%p206) target = $region32
        $region31: #{tpu_custom_call.1} parent=27 // pred_region
          %s209 = sand.u32 %s19, 1
          %s210 = scalar_lea.sflag [#allocation6], %s209
          %s211 = sand.u32 %s50, 1
          %s212 = smul.addr %s211, 2048
          %s213 = scalar_lea.vmem [#allocation5], %s212
          %s214 = smul.u32 4, %s19
          %s216 = ssub.s32 32768, 32768
          %217 = vsyncadd %s210, %s216
          %s218 = smul.addr %s214, 128
          %s219 = scalar_lea.hbm %s1, %s218
          %s220 = sshll.u32 %s213, 4
          %s221 = int_to_ptr.vmem [resolvable:$true] %s220
          %226 = dma.hbm_to_vmem [thread:$0]  %s219, 32768, %s221, %s210, 1024, 512, 32
        $region32: #{tpu_custom_call.1} parent=27 // pred_fallthru
          _
        // Predicated region
        $region33: #{tpu_custom_call.1} parent=27 // pred_check
          %p227 = pneg %p86
        $region34: #{tpu_custom_call.1} parent=27 // pred_check_branch
          %229 = sbr.rel (%p227) target = $region36
        $region35: #{tpu_custom_call.1} parent=27 // pred_region
          %s230 = sand.u32 %s19, 1
          %s231 = scalar_lea.sflag [#allocation6], %s230
          %s232 = sand.u32 %s76, 1
          %s233 = smul.addr %s232, 8
          %s234 = scalar_lea.vmem [#allocation7], %s233
          %s235 = smul.u32 4, %s19
          %s237 = ssub.s32 128, 128
          %238 = vsyncadd %s231, %s237
          %s239 = smul.addr %s235, 32
          %s240 = scalar_lea.hbm %s2, %s239
          %s242 = sshll.u32 %s234, 4
          %s243 = int_to_ptr.vmem [resolvable:$true] %s242
          %245 = dma.hbm_to_vmem [thread:$0]  %s240, 128, %s243, %s231
        $region36: #{tpu_custom_call.1} parent=27 // pred_fallthru
          _
      $region28: #{tpu_custom_call.1} parent=5 // pred_fallthru
        _
      %p246 = scmp.le.s32.totalorder 1, %s19
      %p247 = scmp.lt.s32.totalorder %s19, 3
      %p248 = pnand %p246, %p247
      %p249 = pneg %p248
      // Predicated region
      $region37: #{tpu_custom_call.1} parent=5 // pred_check
        _
      $region38: #{tpu_custom_call.1} parent=5 // pred_check_branch
        %251 = sbr.rel (%p248) target = $region40
      $region39: #{tpu_custom_call.1} parent=5 // pred_region
        %s252 = ssub.s32 %s19, 1
        // Predicated region
        $region41: #{tpu_custom_call.1} parent=39 // pred_check
          %p253 = pneg %p40
        $region42: #{tpu_custom_call.1} parent=39 // pred_check_branch
          %255 = sbr.rel (%p253) target = $region44
        $region43: #{tpu_custom_call.1} parent=39 // pred_region
          %256 = dma.done [#allocation3], 512
        $region44: #{tpu_custom_call.1} parent=39 // pred_fallthru
          _
        %s257 = sand.u32 %s24, 1
        %s258 = scalar_lea.sflag [#allocation6], %s257
        %s259 = sand.u32 %s53, 1
        %s260 = smul.addr %s259, 2048
        %s261 = scalar_lea.vmem [#allocation5], %s260
        // Predicated region
        $region45: #{tpu_custom_call.1} parent=39 // pred_check
          %p262 = pneg %p66
        $region46: #{tpu_custom_call.1} parent=39 // pred_check_branch
          %264 = sbr.rel (%p262) target = $region48
        $region47: #{tpu_custom_call.1} parent=39 // pred_region
          %265 = dma.done %s258, 32768
        $region48: #{tpu_custom_call.1} parent=39 // pred_fallthru
          _
        %s266 = sand.u32 %s24, 1
        %s267 = scalar_lea.sflag [#allocation6], %s266
        %s268 = sand.u32 %s79, 1
        %s269 = smul.addr %s268, 8
        %s270 = scalar_lea.vmem [#allocation7], %s269
        // Predicated region
        $region49: #{tpu_custom_call.1} parent=39 // pred_check
          %p271 = pneg %p92
        $region50: #{tpu_custom_call.1} parent=39 // pred_check_branch
          %273 = sbr.rel (%p271) target = $region52
        $region51: #{tpu_custom_call.1} parent=39 // pred_region
          %274 = dma.done %s267, 128
        $region52: #{tpu_custom_call.1} parent=39 // pred_fallthru
          _
        // Predicated region
        $region53: #{tpu_custom_call.1} parent=39 // pred_check
          %p275 = pneg %p134
        $region54: #{tpu_custom_call.1} parent=39 // pred_check_branch
          %277 = sbr.rel (%p275) target = $region56
        $region55: #{tpu_custom_call.1} parent=39 // pred_region
          %278 = dma.done [#allocation9], 1024
        $region56: #{tpu_custom_call.1} parent=39 // pred_fallthru
          _
        %p279 = pneg %p40
        %p280 = pneg %p37
        %s281 = sand.u32 %s24, 1
        %s282 = scalar_lea.sflag [#allocation6], %s281
        %s283 = sand.u32 %s53, 1
        %s284 = smul.addr %s283, 2048
        %s285 = scalar_lea.vmem [#allocation5], %s284
        %p286 = pneg %p66
        %p287 = pneg %p63
        %s288 = sand.u32 %s24, 1
        %s289 = scalar_lea.sflag [#allocation6], %s288
        %s290 = sand.u32 %s79, 1
        %s291 = smul.addr %s290, 8
        %s292 = scalar_lea.vmem [#allocation7], %s291
        %p293 = pneg %p92
        %p294 = pneg %p89
        %p295 = pneg %p113
        %p296 = pneg %p110
        %p297 = pneg %p134
        %p298 = pneg %p131
        %p299 = pneg %p160
        %p300 = pneg %p157
        %s301 = sand.u32 %s147, 1
        %s302 = scalar_lea.sflag [#allocation4], %s301
        %s303 = sand.u32 %s147, 1
        %s304 = smul.addr %s303, 32
        %s305 = scalar_lea.vmem [#allocation10], %s304
        %s306 = smul.u32 4, %s24
        %s307 = smul.u32 4, %s24
        %s308 = smul.u32 4, %s24
        %v309 = vld [vmem:[#allocation2] sm:$0xff]
        %v310 = vld [vmem:[#allocation2 + $0x8] sm:$0xff]
        %v311 = vld [vmem:[#allocation2 + $0x10] sm:$0xff]
        %v312 = vld [vmem:[#allocation2 + $0x18] sm:$0xff]
        %v313 = vld [vmem:[%s261] sm:$0xff]
        %v314 = vld [vmem:[%s261 + $0x8] sm:$0xff]
        %v315 = vld [vmem:[%s261 + $0x10] sm:$0xff]
        %v316 = vld [vmem:[%s261 + $0x18] sm:$0xff]
        %v317 = vld [vmem:[%s261 + $0x20] sm:$0xff]
        %v318 = vld [vmem:[%s261 + $0x28] sm:$0xff]
        %v319 = vld [vmem:[%s261 + $0x30] sm:$0xff]
        %v320 = vld [vmem:[%s261 + $0x38] sm:$0xff]
        %v321 = vld [vmem:[%s261 + $0x40] sm:$0xff]
        %v322 = vld [vmem:[%s261 + $0x48] sm:$0xff]
        %v323 = vld [vmem:[%s261 + $0x50] sm:$0xff]
        %v324 = vld [vmem:[%s261 + $0x58] sm:$0xff]
        %v325 = vld [vmem:[%s261 + $0x60] sm:$0xff]
        %v326 = vld [vmem:[%s261 + $0x68] sm:$0xff]
        %v327 = vld [vmem:[%s261 + $0x70] sm:$0xff]
        %v328 = vld [vmem:[%s261 + $0x78] sm:$0xff]
        %v329 = vld [vmem:[%s261 + $0x80] sm:$0xff]
        %v330 = vld [vmem:[%s261 + $0x88] sm:$0xff]
        %v331 = vld [vmem:[%s261 + $0x90] sm:$0xff]
        %v332 = vld [vmem:[%s261 + $0x98] sm:$0xff]
        %v333 = vld [vmem:[%s261 + $0xa0] sm:$0xff]
        %v334 = vld [vmem:[%s261 + $0xa8] sm:$0xff]
        %v335 = vld [vmem:[%s261 + $0xb0] sm:$0xff]
        %v336 = vld [vmem:[%s261 + $0xb8] sm:$0xff]
        %v337 = vld [vmem:[%s261 + $0xc0] sm:$0xff]
        %v338 = vld [vmem:[%s261 + $0xc8] sm:$0xff]
        %v339 = vld [vmem:[%s261 + $0xd0] sm:$0xff]
        %v340 = vld [vmem:[%s261 + $0xd8] sm:$0xff]
        %v341 = vld [vmem:[%s261 + $0xe0] sm:$0xff]
        %v342 = vld [vmem:[%s261 + $0xe8] sm:$0xff]
        %v343 = vld [vmem:[%s261 + $0xf0] sm:$0xff]
        %v344 = vld [vmem:[%s261 + $0xf8] sm:$0xff]
        %v345 = vld [vmem:[%s261 + $0x100] sm:$0xff]
        %v346 = vld [vmem:[%s261 + $0x108] sm:$0xff]
        %v347 = vld [vmem:[%s261 + $0x110] sm:$0xff]
        %v348 = vld [vmem:[%s261 + $0x118] sm:$0xff]
        %v349 = vld [vmem:[%s261 + $0x120] sm:$0xff]
        %v350 = vld [vmem:[%s261 + $0x128] sm:$0xff]
        %v351 = vld [vmem:[%s261 + $0x130] sm:$0xff]
        %v352 = vld [vmem:[%s261 + $0x138] sm:$0xff]
        %v353 = vld [vmem:[%s261 + $0x140] sm:$0xff]
        %v354 = vld [vmem:[%s261 + $0x148] sm:$0xff]
        %v355 = vld [vmem:[%s261 + $0x150] sm:$0xff]
        %v356 = vld [vmem:[%s261 + $0x158] sm:$0xff]
        %v357 = vld [vmem:[%s261 + $0x160] sm:$0xff]
        %v358 = vld [vmem:[%s261 + $0x168] sm:$0xff]
        %v359 = vld [vmem:[%s261 + $0x170] sm:$0xff]
        %v360 = vld [vmem:[%s261 + $0x178] sm:$0xff]
        %v361 = vld [vmem:[%s261 + $0x180] sm:$0xff]
        %v362 = vld [vmem:[%s261 + $0x188] sm:$0xff]
        %v363 = vld [vmem:[%s261 + $0x190] sm:$0xff]
        %v364 = vld [vmem:[%s261 + $0x198] sm:$0xff]
        %v365 = vld [vmem:[%s261 + $0x1a0] sm:$0xff]
        %v366 = vld [vmem:[%s261 + $0x1a8] sm:$0xff]
        %v367 = vld [vmem:[%s261 + $0x1b0] sm:$0xff]
        %v368 = vld [vmem:[%s261 + $0x1b8] sm:$0xff]
        %v369 = vld [vmem:[%s261 + $0x1c0] sm:$0xff]
        %v370 = vld [vmem:[%s261 + $0x1c8] sm:$0xff]
        %v371 = vld [vmem:[%s261 + $0x1d0] sm:$0xff]
        %v372 = vld [vmem:[%s261 + $0x1d8] sm:$0xff]
        %v373 = vld [vmem:[%s261 + $0x1e0] sm:$0xff]
        %v374 = vld [vmem:[%s261 + $0x1e8] sm:$0xff]
        %v375 = vld [vmem:[%s261 + $0x1f0] sm:$0xff]
        %v376 = vld [vmem:[%s261 + $0x1f8] sm:$0xff]
        %v377 = vld [vmem:[%s261 + $0x200] sm:$0xff]
        %v378 = vld [vmem:[%s261 + $0x208] sm:$0xff]
        %v379 = vld [vmem:[%s261 + $0x210] sm:$0xff]
        %v380 = vld [vmem:[%s261 + $0x218] sm:$0xff]
        %v381 = vld [vmem:[%s261 + $0x220] sm:$0xff]
        %v382 = vld [vmem:[%s261 + $0x228] sm:$0xff]
        %v383 = vld [vmem:[%s261 + $0x230] sm:$0xff]
        %v384 = vld [vmem:[%s261 + $0x238] sm:$0xff]
        %v385 = vld [vmem:[%s261 + $0x240] sm:$0xff]
        %v386 = vld [vmem:[%s261 + $0x248] sm:$0xff]
        %v387 = vld [vmem:[%s261 + $0x250] sm:$0xff]
        %v388 = vld [vmem:[%s261 + $0x258] sm:$0xff]
        %v389 = vld [vmem:[%s261 + $0x260] sm:$0xff]
        %v390 = vld [vmem:[%s261 + $0x268] sm:$0xff]
        %v391 = vld [vmem:[%s261 + $0x270] sm:$0xff]
        %v392 = vld [vmem:[%s261 + $0x278] sm:$0xff]
        %v393 = vld [vmem:[%s261 + $0x280] sm:$0xff]
        %v394 = vld [vmem:[%s261 + $0x288] sm:$0xff]
        %v395 = vld [vmem:[%s261 + $0x290] sm:$0xff]
        %v396 = vld [vmem:[%s261 + $0x298] sm:$0xff]
        %v397 = vld [vmem:[%s261 + $0x2a0] sm:$0xff]
        %v398 = vld [vmem:[%s261 + $0x2a8] sm:$0xff]
        %v399 = vld [vmem:[%s261 + $0x2b0] sm:$0xff]
        %v400 = vld [vmem:[%s261 + $0x2b8] sm:$0xff]
        %v401 = vld [vmem:[%s261 + $0x2c0] sm:$0xff]
        %v402 = vld [vmem:[%s261 + $0x2c8] sm:$0xff]
        %v403 = vld [vmem:[%s261 + $0x2d0] sm:$0xff]
        %v404 = vld [vmem:[%s261 + $0x2d8] sm:$0xff]
        %v405 = vld [vmem:[%s261 + $0x2e0] sm:$0xff]
        %v406 = vld [vmem:[%s261 + $0x2e8] sm:$0xff]
        %v407 = vld [vmem:[%s261 + $0x2f0] sm:$0xff]
        %v408 = vld [vmem:[%s261 + $0x2f8] sm:$0xff]
        %v409 = vld [vmem:[%s261 + $0x300] sm:$0xff]
        %v410 = vld [vmem:[%s261 + $0x308] sm:$0xff]
        %v411 = vld [vmem:[%s261 + $0x310] sm:$0xff]
        %v412 = vld [vmem:[%s261 + $0x318] sm:$0xff]
        %v413 = vld [vmem:[%s261 + $0x320] sm:$0xff]
        %v414 = vld [vmem:[%s261 + $0x328] sm:$0xff]
        %v415 = vld [vmem:[%s261 + $0x330] sm:$0xff]
        %v416 = vld [vmem:[%s261 + $0x338] sm:$0xff]
        %v417 = vld [vmem:[%s261 + $0x340] sm:$0xff]
        %v418 = vld [vmem:[%s261 + $0x348] sm:$0xff]
        %v419 = vld [vmem:[%s261 + $0x350] sm:$0xff]
        %v420 = vld [vmem:[%s261 + $0x358] sm:$0xff]
        %v421 = vld [vmem:[%s261 + $0x360] sm:$0xff]
        %v422 = vld [vmem:[%s261 + $0x368] sm:$0xff]
        %v423 = vld [vmem:[%s261 + $0x370] sm:$0xff]
        %v424 = vld [vmem:[%s261 + $0x378] sm:$0xff]
        %v425 = vld [vmem:[%s261 + $0x380] sm:$0xff]
        %v426 = vld [vmem:[%s261 + $0x388] sm:$0xff]
        %v427 = vld [vmem:[%s261 + $0x390] sm:$0xff]
        %v428 = vld [vmem:[%s261 + $0x398] sm:$0xff]
        %v429 = vld [vmem:[%s261 + $0x3a0] sm:$0xff]
        %v430 = vld [vmem:[%s261 + $0x3a8] sm:$0xff]
        %v431 = vld [vmem:[%s261 + $0x3b0] sm:$0xff]
        %v432 = vld [vmem:[%s261 + $0x3b8] sm:$0xff]
        %v433 = vld [vmem:[%s261 + $0x3c0] sm:$0xff]
        %v434 = vld [vmem:[%s261 + $0x3c8] sm:$0xff]
        %v435 = vld [vmem:[%s261 + $0x3d0] sm:$0xff]
        %v436 = vld [vmem:[%s261 + $0x3d8] sm:$0xff]
        %v437 = vld [vmem:[%s261 + $0x3e0] sm:$0xff]
        %v438 = vld [vmem:[%s261 + $0x3e8] sm:$0xff]
        %v439 = vld [vmem:[%s261 + $0x3f0] sm:$0xff]
        %v440 = vld [vmem:[%s261 + $0x3f8] sm:$0xff]
        %v441 = vld [vmem:[%s261 + $0x400] sm:$0xff]
        %v442 = vld [vmem:[%s261 + $0x408] sm:$0xff]
        %v443 = vld [vmem:[%s261 + $0x410] sm:$0xff]
        %v444 = vld [vmem:[%s261 + $0x418] sm:$0xff]
        %v445 = vld [vmem:[%s261 + $0x420] sm:$0xff]
        %v446 = vld [vmem:[%s261 + $0x428] sm:$0xff]
        %v447 = vld [vmem:[%s261 + $0x430] sm:$0xff]
        %v448 = vld [vmem:[%s261 + $0x438] sm:$0xff]
        %v449 = vld [vmem:[%s261 + $0x440] sm:$0xff]
        %v450 = vld [vmem:[%s261 + $0x448] sm:$0xff]
        %v451 = vld [vmem:[%s261 + $0x450] sm:$0xff]
        %v452 = vld [vmem:[%s261 + $0x458] sm:$0xff]
        %v453 = vld [vmem:[%s261 + $0x460] sm:$0xff]
        %v454 = vld [vmem:[%s261 + $0x468] sm:$0xff]
        %v455 = vld [vmem:[%s261 + $0x470] sm:$0xff]
        %v456 = vld [vmem:[%s261 + $0x478] sm:$0xff]
        %v457 = vld [vmem:[%s261 + $0x480] sm:$0xff]
        %v458 = vld [vmem:[%s261 + $0x488] sm:$0xff]
        %v459 = vld [vmem:[%s261 + $0x490] sm:$0xff]
        %v460 = vld [vmem:[%s261 + $0x498] sm:$0xff]
        %v461 = vld [vmem:[%s261 + $0x4a0] sm:$0xff]
        %v462 = vld [vmem:[%s261 + $0x4a8] sm:$0xff]
        %v463 = vld [vmem:[%s261 + $0x4b0] sm:$0xff]
        %v464 = vld [vmem:[%s261 + $0x4b8] sm:$0xff]
        %v465 = vld [vmem:[%s261 + $0x4c0] sm:$0xff]
        %v466 = vld [vmem:[%s261 + $0x4c8] sm:$0xff]
        %v467 = vld [vmem:[%s261 + $0x4d0] sm:$0xff]
        %v468 = vld [vmem:[%s261 + $0x4d8] sm:$0xff]
        %v469 = vld [vmem:[%s261 + $0x4e0] sm:$0xff]
        %v470 = vld [vmem:[%s261 + $0x4e8] sm:$0xff]
        %v471 = vld [vmem:[%s261 + $0x4f0] sm:$0xff]
        %v472 = vld [vmem:[%s261 + $0x4f8] sm:$0xff]
        %v473 = vld [vmem:[%s261 + $0x500] sm:$0xff]
        %v474 = vld [vmem:[%s261 + $0x508] sm:$0xff]
        %v475 = vld [vmem:[%s261 + $0x510] sm:$0xff]
        %v476 = vld [vmem:[%s261 + $0x518] sm:$0xff]
        %v477 = vld [vmem:[%s261 + $0x520] sm:$0xff]
        %v478 = vld [vmem:[%s261 + $0x528] sm:$0xff]
        %v479 = vld [vmem:[%s261 + $0x530] sm:$0xff]
        %v480 = vld [vmem:[%s261 + $0x538] sm:$0xff]
        %v481 = vld [vmem:[%s261 + $0x540] sm:$0xff]
        %v482 = vld [vmem:[%s261 + $0x548] sm:$0xff]
        %v483 = vld [vmem:[%s261 + $0x550] sm:$0xff]
        %v484 = vld [vmem:[%s261 + $0x558] sm:$0xff]
        %v485 = vld [vmem:[%s261 + $0x560] sm:$0xff]
        %v486 = vld [vmem:[%s261 + $0x568] sm:$0xff]
        %v487 = vld [vmem:[%s261 + $0x570] sm:$0xff]
        %v488 = vld [vmem:[%s261 + $0x578] sm:$0xff]
        %v489 = vld [vmem:[%s261 + $0x580] sm:$0xff]
        %v490 = vld [vmem:[%s261 + $0x588] sm:$0xff]
        %v491 = vld [vmem:[%s261 + $0x590] sm:$0xff]
        %v492 = vld [vmem:[%s261 + $0x598] sm:$0xff]
        %v493 = vld [vmem:[%s261 + $0x5a0] sm:$0xff]
        %v494 = vld [vmem:[%s261 + $0x5a8] sm:$0xff]
        %v495 = vld [vmem:[%s261 + $0x5b0] sm:$0xff]
        %v496 = vld [vmem:[%s261 + $0x5b8] sm:$0xff]
        %v497 = vld [vmem:[%s261 + $0x5c0] sm:$0xff]
        %v498 = vld [vmem:[%s261 + $0x5c8] sm:$0xff]
        %v499 = vld [vmem:[%s261 + $0x5d0] sm:$0xff]
        %v500 = vld [vmem:[%s261 + $0x5d8] sm:$0xff]
        %v501 = vld [vmem:[%s261 + $0x5e0] sm:$0xff]
        %v502 = vld [vmem:[%s261 + $0x5e8] sm:$0xff]
        %v503 = vld [vmem:[%s261 + $0x5f0] sm:$0xff]
        %v504 = vld [vmem:[%s261 + $0x5f8] sm:$0xff]
        %v505 = vld [vmem:[%s261 + $0x600] sm:$0xff]
        %v506 = vld [vmem:[%s261 + $0x608] sm:$0xff]
        %v507 = vld [vmem:[%s261 + $0x610] sm:$0xff]
        %v508 = vld [vmem:[%s261 + $0x618] sm:$0xff]
        %v509 = vld [vmem:[%s261 + $0x620] sm:$0xff]
        %v510 = vld [vmem:[%s261 + $0x628] sm:$0xff]
        %v511 = vld [vmem:[%s261 + $0x630] sm:$0xff]
        %v512 = vld [vmem:[%s261 + $0x638] sm:$0xff]
        %v513 = vld [vmem:[%s261 + $0x640] sm:$0xff]
        %v514 = vld [vmem:[%s261 + $0x648] sm:$0xff]
        %v515 = vld [vmem:[%s261 + $0x650] sm:$0xff]
        %v516 = vld [vmem:[%s261 + $0x658] sm:$0xff]
        %v517 = vld [vmem:[%s261 + $0x660] sm:$0xff]
        %v518 = vld [vmem:[%s261 + $0x668] sm:$0xff]
        %v519 = vld [vmem:[%s261 + $0x670] sm:$0xff]
        %v520 = vld [vmem:[%s261 + $0x678] sm:$0xff]
        %v521 = vld [vmem:[%s261 + $0x680] sm:$0xff]
        %v522 = vld [vmem:[%s261 + $0x688] sm:$0xff]
        %v523 = vld [vmem:[%s261 + $0x690] sm:$0xff]
        %v524 = vld [vmem:[%s261 + $0x698] sm:$0xff]
        %v525 = vld [vmem:[%s261 + $0x6a0] sm:$0xff]
        %v526 = vld [vmem:[%s261 + $0x6a8] sm:$0xff]
        %v527 = vld [vmem:[%s261 + $0x6b0] sm:$0xff]
        %v528 = vld [vmem:[%s261 + $0x6b8] sm:$0xff]
        %v529 = vld [vmem:[%s261 + $0x6c0] sm:$0xff]
        %v530 = vld [vmem:[%s261 + $0x6c8] sm:$0xff]
        %v531 = vld [vmem:[%s261 + $0x6d0] sm:$0xff]
        %v532 = vld [vmem:[%s261 + $0x6d8] sm:$0xff]
        %v533 = vld [vmem:[%s261 + $0x6e0] sm:$0xff]
        %v534 = vld [vmem:[%s261 + $0x6e8] sm:$0xff]
        %v535 = vld [vmem:[%s261 + $0x6f0] sm:$0xff]
        %v536 = vld [vmem:[%s261 + $0x6f8] sm:$0xff]
        %v537 = vld [vmem:[%s261 + $0x700] sm:$0xff]
        %v538 = vld [vmem:[%s261 + $0x708] sm:$0xff]
        %v539 = vld [vmem:[%s261 + $0x710] sm:$0xff]
        %v540 = vld [vmem:[%s261 + $0x718] sm:$0xff]
        %v541 = vld [vmem:[%s261 + $0x720] sm:$0xff]
        %v542 = vld [vmem:[%s261 + $0x728] sm:$0xff]
        %v543 = vld [vmem:[%s261 + $0x730] sm:$0xff]
        %v544 = vld [vmem:[%s261 + $0x738] sm:$0xff]
        %v545 = vld [vmem:[%s261 + $0x740] sm:$0xff]
        %v546 = vld [vmem:[%s261 + $0x748] sm:$0xff]
        %v547 = vld [vmem:[%s261 + $0x750] sm:$0xff]
        %v548 = vld [vmem:[%s261 + $0x758] sm:$0xff]
        %v549 = vld [vmem:[%s261 + $0x760] sm:$0xff]
        %v550 = vld [vmem:[%s261 + $0x768] sm:$0xff]
        %v551 = vld [vmem:[%s261 + $0x770] sm:$0xff]
        %v552 = vld [vmem:[%s261 + $0x778] sm:$0xff]
        %v553 = vld [vmem:[%s261 + $0x780] sm:$0xff]
        %v554 = vld [vmem:[%s261 + $0x788] sm:$0xff]
        %v555 = vld [vmem:[%s261 + $0x790] sm:$0xff]
        %v556 = vld [vmem:[%s261 + $0x798] sm:$0xff]
        %v557 = vld [vmem:[%s261 + $0x7a0] sm:$0xff]
        %v558 = vld [vmem:[%s261 + $0x7a8] sm:$0xff]
        %v559 = vld [vmem:[%s261 + $0x7b0] sm:$0xff]
        %v560 = vld [vmem:[%s261 + $0x7b8] sm:$0xff]
        %v561 = vld [vmem:[%s261 + $0x7c0] sm:$0xff]
        %v562 = vld [vmem:[%s261 + $0x7c8] sm:$0xff]
        %v563 = vld [vmem:[%s261 + $0x7d0] sm:$0xff]
        %v564 = vld [vmem:[%s261 + $0x7d8] sm:$0xff]
        %v565 = vld [vmem:[%s261 + $0x7e0] sm:$0xff]
        %v566 = vld [vmem:[%s261 + $0x7e8] sm:$0xff]
        %v567 = vld [vmem:[%s261 + $0x7f0] sm:$0xff]
        %v568 = vld [vmem:[%s261 + $0x7f8] sm:$0xff]
        %v569 = vld [vmem:[%s270] ss:$2 sm:$0xf]
        %v571 = vlaneseq
        %v572 = vshrl.u32 %v571, 7
        %v573 = vsub.s32 0, %v572
        %v574 = vrot.slane %v569, %v573
        %v575 = vlaneseq
        %v576 = vshrl.u32 %v575, 7
        %v577 = vsub.s32 1, %v576
        %v578 = vrot.slane %v569, %v577
        %v579 = vlaneseq
        %v580 = vshrl.u32 %v579, 7
        %v581 = vsub.s32 2, %v580
        %v582 = vrot.slane %v569, %v581
        %v583 = vlaneseq
        %v584 = vshrl.u32 %v583, 7
        %v585 = vsub.s32 3, %v584
        %v586 = vrot.slane %v569, %v585
        %591 = vmatprep.subr.mxu0 %v374
        %592 = vmatpush1.msra.mxu0 %v373
        %593 = vmatprep.subr.mxu0 %v370
        %594 = vmatpush1.msra.mxu0 %v369
        %595 = vmatprep.subr.mxu0 %v366
        %596 = vmatpush1.msra.mxu0 %v365
        %597 = vmatprep.subr.mxu0 %v362
        %598 = vmatpush1.msra.mxu0 %v361
        %599 = vmatprep.subr.mxu0 %v358
        %600 = vmatpush1.msra.mxu0 %v357
        %601 = vmatprep.subr.mxu0 %v354
        %602 = vmatpush1.msra.mxu0 %v353
        %603 = vmatprep.subr.mxu0 %v350
        %604 = vmatpush1.msra.mxu0 %v349
        %605 = vmatprep.subr.mxu0 %v346
        %606 = vmatpush1.msra.mxu0 %v345
        %607 = vmatprep.subr.mxu0 %v342
        %608 = vmatpush1.msra.mxu0 %v341
        %609 = vmatprep.subr.mxu0 %v338
        %610 = vmatpush1.msra.mxu0 %v337
        %611 = vmatprep.subr.mxu0 %v334
        %612 = vmatpush1.msra.mxu0 %v333
        %613 = vmatprep.subr.mxu0 %v330
        %614 = vmatpush1.msra.mxu0 %v329
        %615 = vmatprep.subr.mxu0 %v326
        %616 = vmatpush1.msra.mxu0 %v325
        %617 = vmatprep.subr.mxu0 %v322
        %618 = vmatpush1.msra.mxu0 %v321
        %619 = vmatprep.subr.mxu0 %v318
        %620 = vmatpush1.msra.mxu0 %v317
        %621 = vmatprep.subr.mxu0 %v314
        %622 = vmatpush1.msra.mxu0 %v313
        %623 = vmatprep.subr.mxu0 %v438
        %624 = vmatpush2.msra.mxu0 %v437
        %625 = vmatprep.subr.mxu0 %v434
        %626 = vmatpush2.msra.mxu0 %v433
        %627 = vmatprep.subr.mxu0 %v430
        %628 = vmatpush2.msra.mxu0 %v429
        %629 = vmatprep.subr.mxu0 %v426
        %630 = vmatpush2.msra.mxu0 %v425
        %631 = vmatprep.subr.mxu0 %v422
        %632 = vmatpush2.msra.mxu0 %v421
        %633 = vmatprep.subr.mxu0 %v418
        %634 = vmatpush2.msra.mxu0 %v417
        %635 = vmatprep.subr.mxu0 %v414
        %636 = vmatpush2.msra.mxu0 %v413
        %637 = vmatprep.subr.mxu0 %v410
        %638 = vmatpush2.msra.mxu0 %v409
        %639 = vmatprep.subr.mxu0 %v406
        %640 = vmatpush2.msra.mxu0 %v405
        %641 = vmatprep.subr.mxu0 %v402
        %642 = vmatpush2.msra.mxu0 %v401
        %643 = vmatprep.subr.mxu0 %v398
        %644 = vmatpush2.msra.mxu0 %v397
        %645 = vmatprep.subr.mxu0 %v394
        %646 = vmatpush2.msra.mxu0 %v393
        %647 = vmatprep.subr.mxu0 %v390
        %648 = vmatpush2.msra.mxu0 %v389
        %649 = vmatprep.subr.mxu0 %v386
        %650 = vmatpush2.msra.mxu0 %v385
        %651 = vmatprep.subr.mxu0 %v382
        %652 = vmatpush2.msra.mxu0 %v381
        %653 = vmatprep.subr.mxu0 %v378
        %654 = vmatpush2.msra.mxu0 %v377
        %655 = vmatprep.mubr.f32.mxu0 %v310
        %656 = vmatmul.mubr.f32.gmra.mxu0 %v309
        %v657 = vpop.f32.mrf.mxu0
        %v658 = vadd.f32 %v574, %v657
        %v659 = vpop.f32.mrf.mxu0
        %v660 = vadd.f32 %v578, %v659
        %661 = vdwg.mxu0
        %662 = vmatprep.subr.mxu0 %v502
        %663 = vmatpush1.msra.mxu0 %v501
        %664 = vmatprep.subr.mxu0 %v498
        %665 = vmatpush1.msra.mxu0 %v497
        %666 = vmatprep.subr.mxu0 %v494
        %667 = vmatpush1.msra.mxu0 %v493
        %668 = vmatprep.subr.mxu0 %v490
        %669 = vmatpush1.msra.mxu0 %v489
        %670 = vmatprep.subr.mxu0 %v486
        %671 = vmatpush1.msra.mxu0 %v485
        %672 = vmatprep.subr.mxu0 %v482
        %673 = vmatpush1.msra.mxu0 %v481
        %674 = vmatprep.subr.mxu0 %v478
        %675 = vmatpush1.msra.mxu0 %v477
        %676 = vmatprep.subr.mxu0 %v474
        %677 = vmatpush1.msra.mxu0 %v473
        %678 = vmatprep.subr.mxu0 %v470
        %679 = vmatpush1.msra.mxu0 %v469
        %680 = vmatprep.subr.mxu0 %v466
        %681 = vmatpush1.msra.mxu0 %v465
        %682 = vmatprep.subr.mxu0 %v462
        %683 = vmatpush1.msra.mxu0 %v461
        %684 = vmatprep.subr.mxu0 %v458
        %685 = vmatpush1.msra.mxu0 %v457
        %686 = vmatprep.subr.mxu0 %v454
        %687 = vmatpush1.msra.mxu0 %v453
        %688 = vmatprep.subr.mxu0 %v450
        %689 = vmatpush1.msra.mxu0 %v449
        %690 = vmatprep.subr.mxu0 %v446
        %691 = vmatpush1.msra.mxu0 %v445
        %692 = vmatprep.subr.mxu0 %v442
        %693 = vmatpush1.msra.mxu0 %v441
        %694 = vmatprep.subr.mxu0 %v566
        %695 = vmatpush2.msra.mxu0 %v565
        %696 = vmatprep.subr.mxu0 %v562
        %697 = vmatpush2.msra.mxu0 %v561
        %698 = vmatprep.subr.mxu0 %v558
        %699 = vmatpush2.msra.mxu0 %v557
        %700 = vmatprep.subr.mxu0 %v554
        %701 = vmatpush2.msra.mxu0 %v553
        %702 = vmatprep.subr.mxu0 %v550
        %703 = vmatpush2.msra.mxu0 %v549
        %704 = vmatprep.subr.mxu0 %v546
        %705 = vmatpush2.msra.mxu0 %v545
        %706 = vmatprep.subr.mxu0 %v542
        %707 = vmatpush2.msra.mxu0 %v541
        %708 = vmatprep.subr.mxu0 %v538
        %709 = vmatpush2.msra.mxu0 %v537
        %710 = vmatprep.subr.mxu0 %v534
        %711 = vmatpush2.msra.mxu0 %v533
        %712 = vmatprep.subr.mxu0 %v530
        %713 = vmatpush2.msra.mxu0 %v529
        %714 = vmatprep.subr.mxu0 %v526
        %715 = vmatpush2.msra.mxu0 %v525
        %716 = vmatprep.subr.mxu0 %v522
        %717 = vmatpush2.msra.mxu0 %v521
        %718 = vmatprep.subr.mxu0 %v518
        %719 = vmatpush2.msra.mxu0 %v517
        %720 = vmatprep.subr.mxu0 %v514
        %721 = vmatpush2.msra.mxu0 %v513
        %722 = vmatprep.subr.mxu0 %v510
        %723 = vmatpush2.msra.mxu0 %v509
        %724 = vmatprep.subr.mxu0 %v506
        %725 = vmatpush2.msra.mxu0 %v505
        %726 = vmatprep.mubr.f32.mxu0 %v312
        %727 = vmatmul.mubr.f32.gmra.mxu0 %v311
        %v728 = vpop.f32.mrf.mxu0
        %v729 = vadd.f32 %v658, %v728
        %v730 = vpop.f32.mrf.mxu0
        %v731 = vadd.f32 %v660, %v730
        %732 = vdwg.mxu0
        %733 = vmatprep.subr.mxu0 %v376
        %734 = vmatpush1.msra.mxu0 %v375
        %735 = vmatprep.subr.mxu0 %v372
        %736 = vmatpush1.msra.mxu0 %v371
        %737 = vmatprep.subr.mxu0 %v368
        %738 = vmatpush1.msra.mxu0 %v367
        %739 = vmatprep.subr.mxu0 %v364
        %740 = vmatpush1.msra.mxu0 %v363
        %741 = vmatprep.subr.mxu0 %v360
        %742 = vmatpush1.msra.mxu0 %v359
        %743 = vmatprep.subr.mxu0 %v356
        %744 = vmatpush1.msra.mxu0 %v355
        %745 = vmatprep.subr.mxu0 %v352
        %746 = vmatpush1.msra.mxu0 %v351
        %747 = vmatprep.subr.mxu0 %v348
        %748 = vmatpush1.msra.mxu0 %v347
        %749 = vmatprep.subr.mxu0 %v344
        %750 = vmatpush1.msra.mxu0 %v343
        %751 = vmatprep.subr.mxu0 %v340
        %752 = vmatpush1.msra.mxu0 %v339
        %753 = vmatprep.subr.mxu0 %v336
        %754 = vmatpush1.msra.mxu0 %v335
        %755 = vmatprep.subr.mxu0 %v332
        %756 = vmatpush1.msra.mxu0 %v331
        %757 = vmatprep.subr.mxu0 %v328
        %758 = vmatpush1.msra.mxu0 %v327
        %759 = vmatprep.subr.mxu0 %v324
        %760 = vmatpush1.msra.mxu0 %v323
        %761 = vmatprep.subr.mxu0 %v320
        %762 = vmatpush1.msra.mxu0 %v319
        %763 = vmatprep.subr.mxu0 %v316
        %764 = vmatpush1.msra.mxu0 %v315
        %765 = vmatprep.subr.mxu0 %v440
        %766 = vmatpush2.msra.mxu0 %v439
        %767 = vmatprep.subr.mxu0 %v436
        %768 = vmatpush2.msra.mxu0 %v435
        %769 = vmatprep.subr.mxu0 %v432
        %770 = vmatpush2.msra.mxu0 %v431
        %771 = vmatprep.subr.mxu0 %v428
        %772 = vmatpush2.msra.mxu0 %v427
        %773 = vmatprep.subr.mxu0 %v424
        %774 = vmatpush2.msra.mxu0 %v423
        %775 = vmatprep.subr.mxu0 %v420
        %776 = vmatpush2.msra.mxu0 %v419
        %777 = vmatprep.subr.mxu0 %v416
        %778 = vmatpush2.msra.mxu0 %v415
        %779 = vmatprep.subr.mxu0 %v412
        %780 = vmatpush2.msra.mxu0 %v411
        %781 = vmatprep.subr.mxu0 %v408
        %782 = vmatpush2.msra.mxu0 %v407
        %783 = vmatprep.subr.mxu0 %v404
        %784 = vmatpush2.msra.mxu0 %v403
        %785 = vmatprep.subr.mxu0 %v400
        %786 = vmatpush2.msra.mxu0 %v399
        %787 = vmatprep.subr.mxu0 %v396
        %788 = vmatpush2.msra.mxu0 %v395
        %789 = vmatprep.subr.mxu0 %v392
        %790 = vmatpush2.msra.mxu0 %v391
        %791 = vmatprep.subr.mxu0 %v388
        %792 = vmatpush2.msra.mxu0 %v387
        %793 = vmatprep.subr.mxu0 %v384
        %794 = vmatpush2.msra.mxu0 %v383
        %795 = vmatprep.subr.mxu0 %v380
        %796 = vmatpush2.msra.mxu0 %v379
        %797 = vmatprep.mubr.f32.mxu0 %v310
        %798 = vmatmul.mubr.f32.gmra.mxu0 %v309
        %v799 = vpop.f32.mrf.mxu0
        %v800 = vadd.f32 %v582, %v799
        %v801 = vpop.f32.mrf.mxu0
        %v802 = vadd.f32 %v586, %v801
        %803 = vdwg.mxu0
        %804 = vmatprep.subr.mxu0 %v504
        %805 = vmatpush1.msra.mxu0 %v503
        %806 = vmatprep.subr.mxu0 %v500
        %807 = vmatpush1.msra.mxu0 %v499
        %808 = vmatprep.subr.mxu0 %v496
        %809 = vmatpush1.msra.mxu0 %v495
        %810 = vmatprep.subr.mxu0 %v492
        %811 = vmatpush1.msra.mxu0 %v491
        %812 = vmatprep.subr.mxu0 %v488
        %813 = vmatpush1.msra.mxu0 %v487
        %814 = vmatprep.subr.mxu0 %v484
        %815 = vmatpush1.msra.mxu0 %v483
        %816 = vmatprep.subr.mxu0 %v480
        %817 = vmatpush1.msra.mxu0 %v479
        %818 = vmatprep.subr.mxu0 %v476
        %819 = vmatpush1.msra.mxu0 %v475
        %820 = vmatprep.subr.mxu0 %v472
        %821 = vmatpush1.msra.mxu0 %v471
        %822 = vmatprep.subr.mxu0 %v468
        %823 = vmatpush1.msra.mxu0 %v467
        %824 = vmatprep.subr.mxu0 %v464
        %825 = vmatpush1.msra.mxu0 %v463
        %826 = vmatprep.subr.mxu0 %v460
        %827 = vmatpush1.msra.mxu0 %v459
        %828 = vmatprep.subr.mxu0 %v456
        %829 = vmatpush1.msra.mxu0 %v455
        %830 = vmatprep.subr.mxu0 %v452
        %831 = vmatpush1.msra.mxu0 %v451
        %832 = vmatprep.subr.mxu0 %v448
        %833 = vmatpush1.msra.mxu0 %v447
        %834 = vmatprep.subr.mxu0 %v444
        %835 = vmatpush1.msra.mxu0 %v443
        %836 = vmatprep.subr.mxu0 %v568
        %837 = vmatpush2.msra.mxu0 %v567
        %838 = vmatprep.subr.mxu0 %v564
        %839 = vmatpush2.msra.mxu0 %v563
        %840 = vmatprep.subr.mxu0 %v560
        %841 = vmatpush2.msra.mxu0 %v559
        %842 = vmatprep.subr.mxu0 %v556
        %843 = vmatpush2.msra.mxu0 %v555
        %844 = vmatprep.subr.mxu0 %v552
        %845 = vmatpush2.msra.mxu0 %v551
        %846 = vmatprep.subr.mxu0 %v548
        %847 = vmatpush2.msra.mxu0 %v547
        %848 = vmatprep.subr.mxu0 %v544
        %849 = vmatpush2.msra.mxu0 %v543
        %850 = vmatprep.subr.mxu0 %v540
        %851 = vmatpush2.msra.mxu0 %v539
        %852 = vmatprep.subr.mxu0 %v536
        %853 = vmatpush2.msra.mxu0 %v535
        %854 = vmatprep.subr.mxu0 %v532
        %855 = vmatpush2.msra.mxu0 %v531
        %856 = vmatprep.subr.mxu0 %v528
        %857 = vmatpush2.msra.mxu0 %v527
        %858 = vmatprep.subr.mxu0 %v524
        %859 = vmatpush2.msra.mxu0 %v523
        %860 = vmatprep.subr.mxu0 %v520
        %861 = vmatpush2.msra.mxu0 %v519
        %862 = vmatprep.subr.mxu0 %v516
        %863 = vmatpush2.msra.mxu0 %v515
        %864 = vmatprep.subr.mxu0 %v512
        %865 = vmatpush2.msra.mxu0 %v511
        %866 = vmatprep.subr.mxu0 %v508
        %867 = vmatpush2.msra.mxu0 %v507
        %868 = vmatprep.mubr.f32.mxu0 %v312
        %869 = vmatmul.mubr.f32.gmra.mxu0 %v311
        %v870 = vpop.f32.mrf.mxu0
        %v871 = vadd.f32 %v800, %v870
        %v872 = vpop.f32.mrf.mxu0
        %v873 = vadd.f32 %v802, %v872
        %874 = vdwg.mxu0
        %v875 = vxor.u32 %v729, 2147483648
        %v876 = vxor.u32 %v731, 2147483648
        %v877 = vxor.u32 %v871, 2147483648
        %v878 = vxor.u32 %v873, 2147483648
        %v879 = vmul.f32 %v875, 1.442695
        %v880 = vpow.pop %v879
        %v881 = vmul.f32 %v876, 1.442695
        %v882 = vpow.pop %v881
        %v883 = vmul.f32 %v877, 1.442695
        %v884 = vpow.pop %v883
        %v885 = vmul.f32 %v878, 1.442695
        %v886 = vpow.pop %v885
        %v887 = vadd.f32 %v880, 1.0
        %v888 = vadd.f32 %v882, 1.0
        %v889 = vadd.f32 %v884, 1.0
        %v890 = vadd.f32 %v886, 1.0
        %v891 = vrcp.pop %v887
        %v892 = vmul.f32 1.0, %v891
        %v893 = vrcp.pop %v888
        %v894 = vmul.f32 1.0, %v893
        %v895 = vrcp.pop %v889
        %v896 = vmul.f32 1.0, %v895
        %v897 = vrcp.pop %v890
        %v898 = vmul.f32 1.0, %v897
        %v899 = vmul.f32 %v729, %v892
        %v900 = vmul.f32 %v731, %v894
        %v901 = vmul.f32 %v871, %v896
        %v902 = vmul.f32 %v873, %v898
        %s903 = scalar_lea.vmem %s270, 1 [#allocation7]
        %v904 = vld [vmem:[%s903] ss:$2 sm:$0xf]
        %v906 = vlaneseq
        %v907 = vshrl.u32 %v906, 7
        %v908 = vsub.s32 0, %v907
        %v909 = vrot.slane %v904, %v908
        %v910 = vlaneseq
        %v911 = vshrl.u32 %v910, 7
        %v912 = vsub.s32 1, %v911
        %v913 = vrot.slane %v904, %v912
        %v914 = vlaneseq
        %v915 = vshrl.u32 %v914, 7
        %v916 = vsub.s32 2, %v915
        %v917 = vrot.slane %v904, %v916
        %v918 = vlaneseq
        %v919 = vshrl.u32 %v918, 7
        %v920 = vsub.s32 3, %v919
        %v921 = vrot.slane %v904, %v920
        %v926 = vadd.f32 %v899, %v909
        %v927 = vadd.f32 %v900, %v913
        %v928 = vadd.f32 %v901, %v917
        %v929 = vadd.f32 %v902, %v921
        %v930 = vld [vmem:[%s3] sm:$0xff]
        %v931 = vld [vmem:[%s3 + $0x8] sm:$0xff]
        %v932 = vld [vmem:[%s3 + $0x10] sm:$0xff]
        %v933 = vld [vmem:[%s3 + $0x18] sm:$0xff]
        %v934 = vld [vmem:[%s3 + $0x20] sm:$0xff]
        %v935 = vld [vmem:[%s3 + $0x28] sm:$0xff]
        %v936 = vld [vmem:[%s3 + $0x30] sm:$0xff]
        %v937 = vld [vmem:[%s3 + $0x38] sm:$0xff]
        %v938 = vld [vmem:[%s3 + $0x40] sm:$0xff]
        %v939 = vld [vmem:[%s3 + $0x48] sm:$0xff]
        %v940 = vld [vmem:[%s3 + $0x50] sm:$0xff]
        %v941 = vld [vmem:[%s3 + $0x58] sm:$0xff]
        %v942 = vld [vmem:[%s3 + $0x60] sm:$0xff]
        %v943 = vld [vmem:[%s3 + $0x68] sm:$0xff]
        %v944 = vld [vmem:[%s3 + $0x70] sm:$0xff]
        %v945 = vld [vmem:[%s3 + $0x78] sm:$0xff]
        %v946 = vld [vmem:[%s3 + $0x80] sm:$0xff]
        %v947 = vld [vmem:[%s3 + $0x88] sm:$0xff]
        %v948 = vld [vmem:[%s3 + $0x90] sm:$0xff]
        %v949 = vld [vmem:[%s3 + $0x98] sm:$0xff]
        %v950 = vld [vmem:[%s3 + $0xa0] sm:$0xff]
        %v951 = vld [vmem:[%s3 + $0xa8] sm:$0xff]
        %v952 = vld [vmem:[%s3 + $0xb0] sm:$0xff]
        %v953 = vld [vmem:[%s3 + $0xb8] sm:$0xff]
        %v954 = vld [vmem:[%s3 + $0xc0] sm:$0xff]
        %v955 = vld [vmem:[%s3 + $0xc8] sm:$0xff]
        %v956 = vld [vmem:[%s3 + $0xd0] sm:$0xff]
        %v957 = vld [vmem:[%s3 + $0xd8] sm:$0xff]
        %v958 = vld [vmem:[%s3 + $0xe0] sm:$0xff]
        %v959 = vld [vmem:[%s3 + $0xe8] sm:$0xff]
        %v960 = vld [vmem:[%s3 + $0xf0] sm:$0xff]
        %v961 = vld [vmem:[%s3 + $0xf8] sm:$0xff]
        %v962 = vld [vmem:[%s3 + $0x100] sm:$0xff]
        %v963 = vld [vmem:[%s3 + $0x108] sm:$0xff]
        %v964 = vld [vmem:[%s3 + $0x110] sm:$0xff]
        %v965 = vld [vmem:[%s3 + $0x118] sm:$0xff]
        %v966 = vld [vmem:[%s3 + $0x120] sm:$0xff]
        %v967 = vld [vmem:[%s3 + $0x128] sm:$0xff]
        %v968 = vld [vmem:[%s3 + $0x130] sm:$0xff]
        %v969 = vld [vmem:[%s3 + $0x138] sm:$0xff]
        %v970 = vld [vmem:[%s3 + $0x140] sm:$0xff]
        %v971 = vld [vmem:[%s3 + $0x148] sm:$0xff]
        %v972 = vld [vmem:[%s3 + $0x150] sm:$0xff]
        %v973 = vld [vmem:[%s3 + $0x158] sm:$0xff]
        %v974 = vld [vmem:[%s3 + $0x160] sm:$0xff]
        %v975 = vld [vmem:[%s3 + $0x168] sm:$0xff]
        %v976 = vld [vmem:[%s3 + $0x170] sm:$0xff]
        %v977 = vld [vmem:[%s3 + $0x178] sm:$0xff]
        %v978 = vld [vmem:[%s3 + $0x180] sm:$0xff]
        %v979 = vld [vmem:[%s3 + $0x188] sm:$0xff]
        %v980 = vld [vmem:[%s3 + $0x190] sm:$0xff]
        %v981 = vld [vmem:[%s3 + $0x198] sm:$0xff]
        %v982 = vld [vmem:[%s3 + $0x1a0] sm:$0xff]
        %v983 = vld [vmem:[%s3 + $0x1a8] sm:$0xff]
        %v984 = vld [vmem:[%s3 + $0x1b0] sm:$0xff]
        %v985 = vld [vmem:[%s3 + $0x1b8] sm:$0xff]
        %v986 = vld [vmem:[%s3 + $0x1c0] sm:$0xff]
        %v987 = vld [vmem:[%s3 + $0x1c8] sm:$0xff]
        %v988 = vld [vmem:[%s3 + $0x1d0] sm:$0xff]
        %v989 = vld [vmem:[%s3 + $0x1d8] sm:$0xff]
        %v990 = vld [vmem:[%s3 + $0x1e0] sm:$0xff]
        %v991 = vld [vmem:[%s3 + $0x1e8] sm:$0xff]
        %v992 = vld [vmem:[%s3 + $0x1f0] sm:$0xff]
        %v993 = vld [vmem:[%s3 + $0x1f8] sm:$0xff]
        %v994 = vld [vmem:[#allocation8] sm:$0xff]
        %v995 = vld [vmem:[#allocation8 + $0x8] sm:$0xff]
        %v996 = vld [vmem:[#allocation8 + $0x10] sm:$0xff]
        %v997 = vld [vmem:[#allocation8 + $0x18] sm:$0xff]
        %v998 = vld [vmem:[#allocation8 + $0x20] sm:$0xff]
        %v999 = vld [vmem:[#allocation8 + $0x28] sm:$0xff]
        %v1000 = vld [vmem:[#allocation8 + $0x30] sm:$0xff]
        %v1001 = vld [vmem:[#allocation8 + $0x38] sm:$0xff]
        %1002 = vmatprep.subr.mxu0 0.0
        %1003 = vmatpush1.msra.mxu0 %v945
        %1004 = vmatprep.subr.mxu0 0.0
        %1005 = vmatpush1.msra.mxu0 %v944
        %1006 = vmatprep.subr.mxu0 0.0
        %1007 = vmatpush1.msra.mxu0 %v943
        %1008 = vmatprep.subr.mxu0 0.0
        %1009 = vmatpush1.msra.mxu0 %v942
        %1010 = vmatprep.subr.mxu0 0.0
        %1011 = vmatpush1.msra.mxu0 %v941
        %1012 = vmatprep.subr.mxu0 0.0
        %1013 = vmatpush1.msra.mxu0 %v940
        %1014 = vmatprep.subr.mxu0 0.0
        %1015 = vmatpush1.msra.mxu0 %v939
        %1016 = vmatprep.subr.mxu0 0.0
        %1017 = vmatpush1.msra.mxu0 %v938
        %1018 = vmatprep.subr.mxu0 0.0
        %1019 = vmatpush1.msra.mxu0 %v937
        %1020 = vmatprep.subr.mxu0 0.0
        %1021 = vmatpush1.msra.mxu0 %v936
        %1022 = vmatprep.subr.mxu0 0.0
        %1023 = vmatpush1.msra.mxu0 %v935
        %1024 = vmatprep.subr.mxu0 0.0
        %1025 = vmatpush1.msra.mxu0 %v934
        %1026 = vmatprep.subr.mxu0 0.0
        %1027 = vmatpush1.msra.mxu0 %v933
        %1028 = vmatprep.subr.mxu0 0.0
        %1029 = vmatpush1.msra.mxu0 %v932
        %1030 = vmatprep.subr.mxu0 0.0
        %1031 = vmatpush1.msra.mxu0 %v931
        %1032 = vmatprep.subr.mxu0 0.0
        %1033 = vmatpush1.msra.mxu0 %v930
        %1034 = vmatprep.subr.mxu0 0.0
        %1035 = vmatpush2.msra.mxu0 %v961
        %1036 = vmatprep.subr.mxu0 0.0
        %1037 = vmatpush2.msra.mxu0 %v960
        %1038 = vmatprep.subr.mxu0 0.0
        %1039 = vmatpush2.msra.mxu0 %v959
        %1040 = vmatprep.subr.mxu0 0.0
        %1041 = vmatpush2.msra.mxu0 %v958
        %1042 = vmatprep.subr.mxu0 0.0
        %1043 = vmatpush2.msra.mxu0 %v957
        %1044 = vmatprep.subr.mxu0 0.0
        %1045 = vmatpush2.msra.mxu0 %v956
        %1046 = vmatprep.subr.mxu0 0.0
        %1047 = vmatpush2.msra.mxu0 %v955
        %1048 = vmatprep.subr.mxu0 0.0
        %1049 = vmatpush2.msra.mxu0 %v954
        %1050 = vmatprep.subr.mxu0 0.0
        %1051 = vmatpush2.msra.mxu0 %v953
        %1052 = vmatprep.subr.mxu0 0.0
        %1053 = vmatpush2.msra.mxu0 %v952
        %1054 = vmatprep.subr.mxu0 0.0
        %1055 = vmatpush2.msra.mxu0 %v951
        %1056 = vmatprep.subr.mxu0 0.0
        %1057 = vmatpush2.msra.mxu0 %v950
        %1058 = vmatprep.subr.mxu0 0.0
        %1059 = vmatpush2.msra.mxu0 %v949
        %1060 = vmatprep.subr.mxu0 0.0
        %1061 = vmatpush2.msra.mxu0 %v948
        %1062 = vmatprep.subr.mxu0 0.0
        %1063 = vmatpush2.msra.mxu0 %v947
        %1064 = vmatprep.subr.mxu0 0.0
        %1065 = vmatpush2.msra.mxu0 %v946
        %1066 = vmatprep.mubr.f32.mxu0 %v927
        %1067 = vmatmul.mubr.f32.gmra.mxu0 %v926
        %v1068 = vpop.f32.mrf.mxu0
        %v1069 = vadd.f32 0.0, %v1068
        %v1070 = vpop.f32.mrf.mxu0
        %1071 = vdwg.mxu0
        %1072 = vmatprep.subr.mxu0 0.0
        %1073 = vmatpush1.msra.mxu0 %v977
        %1074 = vmatprep.subr.mxu0 0.0
        %1075 = vmatpush1.msra.mxu0 %v976
        %1076 = vmatprep.subr.mxu0 0.0
        %1077 = vmatpush1.msra.mxu0 %v975
        %1078 = vmatprep.subr.mxu0 0.0
        %1079 = vmatpush1.msra.mxu0 %v974
        %1080 = vmatprep.subr.mxu0 0.0
        %1081 = vmatpush1.msra.mxu0 %v973
        %1082 = vmatprep.subr.mxu0 0.0
        %1083 = vmatpush1.msra.mxu0 %v972
        %1084 = vmatprep.subr.mxu0 0.0
        %1085 = vmatpush1.msra.mxu0 %v971
        %1086 = vmatprep.subr.mxu0 0.0
        %1087 = vmatpush1.msra.mxu0 %v970
        %1088 = vmatprep.subr.mxu0 0.0
        %1089 = vmatpush1.msra.mxu0 %v969
        %1090 = vmatprep.subr.mxu0 0.0
        %1091 = vmatpush1.msra.mxu0 %v968
        %1092 = vmatprep.subr.mxu0 0.0
        %1093 = vmatpush1.msra.mxu0 %v967
        %1094 = vmatprep.subr.mxu0 0.0
        %1095 = vmatpush1.msra.mxu0 %v966
        %1096 = vmatprep.subr.mxu0 0.0
        %1097 = vmatpush1.msra.mxu0 %v965
        %1098 = vmatprep.subr.mxu0 0.0
        %1099 = vmatpush1.msra.mxu0 %v964
        %1100 = vmatprep.subr.mxu0 0.0
        %1101 = vmatpush1.msra.mxu0 %v963
        %1102 = vmatprep.subr.mxu0 0.0
        %1103 = vmatpush1.msra.mxu0 %v962
        %1104 = vmatprep.subr.mxu0 0.0
        %1105 = vmatpush2.msra.mxu0 %v993
        %1106 = vmatprep.subr.mxu0 0.0
        %1107 = vmatpush2.msra.mxu0 %v992
        %1108 = vmatprep.subr.mxu0 0.0
        %1109 = vmatpush2.msra.mxu0 %v991
        %1110 = vmatprep.subr.mxu0 0.0
        %1111 = vmatpush2.msra.mxu0 %v990
        %1112 = vmatprep.subr.mxu0 0.0
        %1113 = vmatpush2.msra.mxu0 %v989
        %1114 = vmatprep.subr.mxu0 0.0
        %1115 = vmatpush2.msra.mxu0 %v988
        %1116 = vmatprep.subr.mxu0 0.0
        %1117 = vmatpush2.msra.mxu0 %v987
        %1118 = vmatprep.subr.mxu0 0.0
        %1119 = vmatpush2.msra.mxu0 %v986
        %1120 = vmatprep.subr.mxu0 0.0
        %1121 = vmatpush2.msra.mxu0 %v985
        %1122 = vmatprep.subr.mxu0 0.0
        %1123 = vmatpush2.msra.mxu0 %v984
        %1124 = vmatprep.subr.mxu0 0.0
        %1125 = vmatpush2.msra.mxu0 %v983
        %1126 = vmatprep.subr.mxu0 0.0
        %1127 = vmatpush2.msra.mxu0 %v982
        %1128 = vmatprep.subr.mxu0 0.0
        %1129 = vmatpush2.msra.mxu0 %v981
        %1130 = vmatprep.subr.mxu0 0.0
        %1131 = vmatpush2.msra.mxu0 %v980
        %1132 = vmatprep.subr.mxu0 0.0
        %1133 = vmatpush2.msra.mxu0 %v979
        %1134 = vmatprep.subr.mxu0 0.0
        %1135 = vmatpush2.msra.mxu0 %v978
        %1136 = vmatprep.mubr.f32.mxu0 %v929
        %1137 = vmatmul.mubr.f32.gmra.mxu0 %v928
        %v1138 = vpop.f32.mrf.mxu0
        %v1139 = vadd.f32 %v1069, %v1138
        %v1140 = vpop.f32.mrf.mxu0
        %1141 = vdwg.mxu0
        %vm1142 = vcmask 130048
        %v1144 = vsel %vm1142, %v1139, 0
        %1146 = vmatprep.subr.mxu0 0.0
        %1147 = vmatpush1.msra.mxu0 0.0
        %1148 = vmatprep.subr.mxu0 0.0
        %1149 = vmatpush1.msra.mxu0 0.0
        %1150 = vmatprep.subr.mxu0 0.0
        %1151 = vmatpush1.msra.mxu0 0.0
        %1152 = vmatprep.subr.mxu0 0.0
        %1153 = vmatpush1.msra.mxu0 0.0
        %1154 = vmatprep.subr.mxu0 0.0
        %1155 = vmatpush1.msra.mxu0 0.0
        %1156 = vmatprep.subr.mxu0 0.0
        %1157 = vmatpush1.msra.mxu0 0.0
        %1158 = vmatprep.subr.mxu0 0.0
        %1159 = vmatpush1.msra.mxu0 0.0
        %1160 = vmatprep.subr.mxu0 0.0
        %1161 = vmatpush1.msra.mxu0 0.0
        %1162 = vmatprep.subr.mxu0 0.0
        %1163 = vmatpush1.msra.mxu0 0.0
        %1164 = vmatprep.subr.mxu0 0.0
        %1165 = vmatpush1.msra.mxu0 0.0
        %1166 = vmatprep.subr.mxu0 0.0
        %1167 = vmatpush1.msra.mxu0 0.0
        %1168 = vmatprep.subr.mxu0 0.0
        %1169 = vmatpush1.msra.mxu0 0.0
        %1170 = vmatprep.subr.mxu0 0.0
        %1171 = vmatpush1.msra.mxu0 0.0
        %1172 = vmatprep.subr.mxu0 0.0
        %1173 = vmatpush1.msra.mxu0 0.0
        %1174 = vmatprep.subr.mxu0 %v999
        %1175 = vmatpush1.msra.mxu0 %v998
        %1176 = vmatprep.subr.mxu0 %v995
        %1177 = vmatpush1.msra.mxu0 %v994
        %1178 = vmatprep.subr.mxu0 0.0
        %1179 = vmatpush2.msra.mxu0 0.0
        %1180 = vmatprep.subr.mxu0 0.0
        %1181 = vmatpush2.msra.mxu0 0.0
        %1182 = vmatprep.subr.mxu0 0.0
        %1183 = vmatpush2.msra.mxu0 0.0
        %1184 = vmatprep.subr.mxu0 0.0
        %1185 = vmatpush2.msra.mxu0 0.0
        %1186 = vmatprep.subr.mxu0 0.0
        %1187 = vmatpush2.msra.mxu0 0.0
        %1188 = vmatprep.subr.mxu0 0.0
        %1189 = vmatpush2.msra.mxu0 0.0
        %1190 = vmatprep.subr.mxu0 0.0
        %1191 = vmatpush2.msra.mxu0 0.0
        %1192 = vmatprep.subr.mxu0 0.0
        %1193 = vmatpush2.msra.mxu0 0.0
        %1194 = vmatprep.subr.mxu0 0.0
        %1195 = vmatpush2.msra.mxu0 0.0
        %1196 = vmatprep.subr.mxu0 0.0
        %1197 = vmatpush2.msra.mxu0 0.0
        %1198 = vmatprep.subr.mxu0 0.0
        %1199 = vmatpush2.msra.mxu0 0.0
        %1200 = vmatprep.subr.mxu0 0.0
        %1201 = vmatpush2.msra.mxu0 0.0
        %1202 = vmatprep.subr.mxu0 0.0
        %1203 = vmatpush2.msra.mxu0 0.0
        %1204 = vmatprep.subr.mxu0 0.0
        %1205 = vmatpush2.msra.mxu0 0.0
        %1206 = vmatprep.subr.mxu0 0.0
        %1207 = vmatpush2.msra.mxu0 0.0
        %1208 = vmatprep.subr.mxu0 0.0
        %1209 = vmatpush2.msra.mxu0 0.0
        %1210 = vmatprep.mubr.f32.mxu0 0.0
        %1211 = vmatmul.mubr.f32.gmra.mxu0 %v1144
        %v1212 = vpop.f32.mrf.mxu0
        %v1213 = vadd.f32 0.0, %v1212
        %v1214 = vpop.f32.mrf.mxu0
        %v1215 = vadd.f32 0.0, %v1214
        %1216 = vdwg.mxu0
        %1217 = vmatprep.subr.mxu0 0.0
        %1218 = vmatpush1.msra.mxu0 0.0
        %1219 = vmatprep.subr.mxu0 0.0
        %1220 = vmatpush1.msra.mxu0 0.0
        %1221 = vmatprep.subr.mxu0 0.0
        %1222 = vmatpush1.msra.mxu0 0.0
        %1223 = vmatprep.subr.mxu0 0.0
        %1224 = vmatpush1.msra.mxu0 0.0
        %1225 = vmatprep.subr.mxu0 0.0
        %1226 = vmatpush1.msra.mxu0 0.0
        %1227 = vmatprep.subr.mxu0 0.0
        %1228 = vmatpush1.msra.mxu0 0.0
        %1229 = vmatprep.subr.mxu0 0.0
        %1230 = vmatpush1.msra.mxu0 0.0
        %1231 = vmatprep.subr.mxu0 0.0
        %1232 = vmatpush1.msra.mxu0 0.0
        %1233 = vmatprep.subr.mxu0 0.0
        %1234 = vmatpush1.msra.mxu0 0.0
        %1235 = vmatprep.subr.mxu0 0.0
        %1236 = vmatpush1.msra.mxu0 0.0
        %1237 = vmatprep.subr.mxu0 0.0
        %1238 = vmatpush1.msra.mxu0 0.0
        %1239 = vmatprep.subr.mxu0 0.0
        %1240 = vmatpush1.msra.mxu0 0.0
        %1241 = vmatprep.subr.mxu0 0.0
        %1242 = vmatpush1.msra.mxu0 0.0
        %1243 = vmatprep.subr.mxu0 0.0
        %1244 = vmatpush1.msra.mxu0 0.0
        %1245 = vmatprep.subr.mxu0 %v1001
        %1246 = vmatpush1.msra.mxu0 %v1000
        %1247 = vmatprep.subr.mxu0 %v997
        %1248 = vmatpush1.msra.mxu0 %v996
        %1249 = vmatprep.subr.mxu0 0.0
        %1250 = vmatpush2.msra.mxu0 0.0
        %1251 = vmatprep.subr.mxu0 0.0
        %1252 = vmatpush2.msra.mxu0 0.0
        %1253 = vmatprep.subr.mxu0 0.0
        %1254 = vmatpush2.msra.mxu0 0.0
        %1255 = vmatprep.subr.mxu0 0.0
        %1256 = vmatpush2.msra.mxu0 0.0
        %1257 = vmatprep.subr.mxu0 0.0
        %1258 = vmatpush2.msra.mxu0 0.0
        %1259 = vmatprep.subr.mxu0 0.0
        %1260 = vmatpush2.msra.mxu0 0.0
        %1261 = vmatprep.subr.mxu0 0.0
        %1262 = vmatpush2.msra.mxu0 0.0
        %1263 = vmatprep.subr.mxu0 0.0
        %1264 = vmatpush2.msra.mxu0 0.0
        %1265 = vmatprep.subr.mxu0 0.0
        %1266 = vmatpush2.msra.mxu0 0.0
        %1267 = vmatprep.subr.mxu0 0.0
        %1268 = vmatpush2.msra.mxu0 0.0
        %1269 = vmatprep.subr.mxu0 0.0
        %1270 = vmatpush2.msra.mxu0 0.0
        %1271 = vmatprep.subr.mxu0 0.0
        %1272 = vmatpush2.msra.mxu0 0.0
        %1273 = vmatprep.subr.mxu0 0.0
        %1274 = vmatpush2.msra.mxu0 0.0
        %1275 = vmatprep.subr.mxu0 0.0
        %1276 = vmatpush2.msra.mxu0 0.0
        %1277 = vmatprep.subr.mxu0 0.0
        %1278 = vmatpush2.msra.mxu0 0.0
        %1279 = vmatprep.subr.mxu0 0.0
        %1280 = vmatpush2.msra.mxu0 0.0
        %1281 = vmatprep.mubr.f32.mxu0 0.0
        %1282 = vmatmul.mubr.f32.gmra.mxu0 %v1144
        %v1283 = vpop.f32.mrf.mxu0
        %v1284 = vadd.f32 0.0, %v1283
        %v1285 = vpop.f32.mrf.mxu0
        %v1286 = vadd.f32 0.0, %v1285
        %1287 = vdwg.mxu0
        %v1288 = vsub.f32 %v926, %v1213
        %v1289 = vsub.f32 %v927, %v1215
        %v1290 = vsub.f32 %v928, %v1284
        %v1291 = vsub.f32 %v929, %v1286
        %v1292 = vmul.f32 %v1288, %v1288
        %v1293 = vmul.f32 %v1289, %v1289
        %v1294 = vmul.f32 %v1290, %v1290
        %v1295 = vmul.f32 %v1291, %v1291
        %1296 = vmatprep.subr.mxu0 0.0
        %1297 = vmatpush1.msra.mxu0 %v945
        %1298 = vmatprep.subr.mxu0 0.0
        %1299 = vmatpush1.msra.mxu0 %v944
        %1300 = vmatprep.subr.mxu0 0.0
        %1301 = vmatpush1.msra.mxu0 %v943
        %1302 = vmatprep.subr.mxu0 0.0
        %1303 = vmatpush1.msra.mxu0 %v942
        %1304 = vmatprep.subr.mxu0 0.0
        %1305 = vmatpush1.msra.mxu0 %v941
        %1306 = vmatprep.subr.mxu0 0.0
        %1307 = vmatpush1.msra.mxu0 %v940
        %1308 = vmatprep.subr.mxu0 0.0
        %1309 = vmatpush1.msra.mxu0 %v939
        %1310 = vmatprep.subr.mxu0 0.0
        %1311 = vmatpush1.msra.mxu0 %v938
        %1312 = vmatprep.subr.mxu0 0.0
        %1313 = vmatpush1.msra.mxu0 %v937
        %1314 = vmatprep.subr.mxu0 0.0
        %1315 = vmatpush1.msra.mxu0 %v936
        %1316 = vmatprep.subr.mxu0 0.0
        %1317 = vmatpush1.msra.mxu0 %v935
        %1318 = vmatprep.subr.mxu0 0.0
        %1319 = vmatpush1.msra.mxu0 %v934
        %1320 = vmatprep.subr.mxu0 0.0
        %1321 = vmatpush1.msra.mxu0 %v933
        %1322 = vmatprep.subr.mxu0 0.0
        %1323 = vmatpush1.msra.mxu0 %v932
        %1324 = vmatprep.subr.mxu0 0.0
        %1325 = vmatpush1.msra.mxu0 %v931
        %1326 = vmatprep.subr.mxu0 0.0
        %1327 = vmatpush1.msra.mxu0 %v930
        %1328 = vmatprep.subr.mxu0 0.0
        %1329 = vmatpush2.msra.mxu0 %v961
        %1330 = vmatprep.subr.mxu0 0.0
        %1331 = vmatpush2.msra.mxu0 %v960
        %1332 = vmatprep.subr.mxu0 0.0
        %1333 = vmatpush2.msra.mxu0 %v959
        %1334 = vmatprep.subr.mxu0 0.0
        %1335 = vmatpush2.msra.mxu0 %v958
        %1336 = vmatprep.subr.mxu0 0.0
        %1337 = vmatpush2.msra.mxu0 %v957
        %1338 = vmatprep.subr.mxu0 0.0
        %1339 = vmatpush2.msra.mxu0 %v956
        %1340 = vmatprep.subr.mxu0 0.0
        %1341 = vmatpush2.msra.mxu0 %v955
        %1342 = vmatprep.subr.mxu0 0.0
        %1343 = vmatpush2.msra.mxu0 %v954
        %1344 = vmatprep.subr.mxu0 0.0
        %1345 = vmatpush2.msra.mxu0 %v953
        %1346 = vmatprep.subr.mxu0 0.0
        %1347 = vmatpush2.msra.mxu0 %v952
        %1348 = vmatprep.subr.mxu0 0.0
        %1349 = vmatpush2.msra.mxu0 %v951
        %1350 = vmatprep.subr.mxu0 0.0
        %1351 = vmatpush2.msra.mxu0 %v950
        %1352 = vmatprep.subr.mxu0 0.0
        %1353 = vmatpush2.msra.mxu0 %v949
        %1354 = vmatprep.subr.mxu0 0.0
        %1355 = vmatpush2.msra.mxu0 %v948
        %1356 = vmatprep.subr.mxu0 0.0
        %1357 = vmatpush2.msra.mxu0 %v947
        %1358 = vmatprep.subr.mxu0 0.0
        %1359 = vmatpush2.msra.mxu0 %v946
        %1360 = vmatprep.mubr.f32.mxu0 %v1293
        %1361 = vmatmul.mubr.f32.gmra.mxu0 %v1292
        %v1362 = vpop.f32.mrf.mxu0
        %v1363 = vadd.f32 1e-05, %v1362
        %v1364 = vpop.f32.mrf.mxu0
        %1365 = vdwg.mxu0
        %1366 = vmatprep.subr.mxu0 0.0
        %1367 = vmatpush1.msra.mxu0 %v977
        %1368 = vmatprep.subr.mxu0 0.0
        %1369 = vmatpush1.msra.mxu0 %v976
        %1370 = vmatprep.subr.mxu0 0.0
        %1371 = vmatpush1.msra.mxu0 %v975
        %1372 = vmatprep.subr.mxu0 0.0
        %1373 = vmatpush1.msra.mxu0 %v974
        %1374 = vmatprep.subr.mxu0 0.0
        %1375 = vmatpush1.msra.mxu0 %v973
        %1376 = vmatprep.subr.mxu0 0.0
        %1377 = vmatpush1.msra.mxu0 %v972
        %1378 = vmatprep.subr.mxu0 0.0
        %1379 = vmatpush1.msra.mxu0 %v971
        %1380 = vmatprep.subr.mxu0 0.0
        %1381 = vmatpush1.msra.mxu0 %v970
        %1382 = vmatprep.subr.mxu0 0.0
        %1383 = vmatpush1.msra.mxu0 %v969
        %1384 = vmatprep.subr.mxu0 0.0
        %1385 = vmatpush1.msra.mxu0 %v968
        %1386 = vmatprep.subr.mxu0 0.0
        %1387 = vmatpush1.msra.mxu0 %v967
        %1388 = vmatprep.subr.mxu0 0.0
        %1389 = vmatpush1.msra.mxu0 %v966
        %1390 = vmatprep.subr.mxu0 0.0
        %1391 = vmatpush1.msra.mxu0 %v965
        %1392 = vmatprep.subr.mxu0 0.0
        %1393 = vmatpush1.msra.mxu0 %v964
        %1394 = vmatprep.subr.mxu0 0.0
        %1395 = vmatpush1.msra.mxu0 %v963
        %1396 = vmatprep.subr.mxu0 0.0
        %1397 = vmatpush1.msra.mxu0 %v962
        %1398 = vmatprep.subr.mxu0 0.0
        %1399 = vmatpush2.msra.mxu0 %v993
        %1400 = vmatprep.subr.mxu0 0.0
        %1401 = vmatpush2.msra.mxu0 %v992
        %1402 = vmatprep.subr.mxu0 0.0
        %1403 = vmatpush2.msra.mxu0 %v991
        %1404 = vmatprep.subr.mxu0 0.0
        %1405 = vmatpush2.msra.mxu0 %v990
        %1406 = vmatprep.subr.mxu0 0.0
        %1407 = vmatpush2.msra.mxu0 %v989
        %1408 = vmatprep.subr.mxu0 0.0
        %1409 = vmatpush2.msra.mxu0 %v988
        %1410 = vmatprep.subr.mxu0 0.0
        %1411 = vmatpush2.msra.mxu0 %v987
        %1412 = vmatprep.subr.mxu0 0.0
        %1413 = vmatpush2.msra.mxu0 %v986
        %1414 = vmatprep.subr.mxu0 0.0
        %1415 = vmatpush2.msra.mxu0 %v985
        %1416 = vmatprep.subr.mxu0 0.0
        %1417 = vmatpush2.msra.mxu0 %v984
        %1418 = vmatprep.subr.mxu0 0.0
        %1419 = vmatpush2.msra.mxu0 %v983
        %1420 = vmatprep.subr.mxu0 0.0
        %1421 = vmatpush2.msra.mxu0 %v982
        %1422 = vmatprep.subr.mxu0 0.0
        %1423 = vmatpush2.msra.mxu0 %v981
        %1424 = vmatprep.subr.mxu0 0.0
        %1425 = vmatpush2.msra.mxu0 %v980
        %1426 = vmatprep.subr.mxu0 0.0
        %1427 = vmatpush2.msra.mxu0 %v979
        %1428 = vmatprep.subr.mxu0 0.0
        %1429 = vmatpush2.msra.mxu0 %v978
        %1430 = vmatprep.mubr.f32.mxu0 %v1295
        %1431 = vmatmul.mubr.f32.gmra.mxu0 %v1294
        %v1432 = vpop.f32.mrf.mxu0
        %v1433 = vadd.f32 %v1363, %v1432
        %v1434 = vpop.f32.mrf.mxu0
        %1435 = vdwg.mxu0
        %v1436 = vrsqrt.pop %v1433
        %v1438 = vsel %vm1142, %v1436, 0
        %1440 = vmatprep.subr.mxu0 0.0
        %1441 = vmatpush1.msra.mxu0 0.0
        %1442 = vmatprep.subr.mxu0 0.0
        %1443 = vmatpush1.msra.mxu0 0.0
        %1444 = vmatprep.subr.mxu0 0.0
        %1445 = vmatpush1.msra.mxu0 0.0
        %1446 = vmatprep.subr.mxu0 0.0
        %1447 = vmatpush1.msra.mxu0 0.0
        %1448 = vmatprep.subr.mxu0 0.0
        %1449 = vmatpush1.msra.mxu0 0.0
        %1450 = vmatprep.subr.mxu0 0.0
        %1451 = vmatpush1.msra.mxu0 0.0
        %1452 = vmatprep.subr.mxu0 0.0
        %1453 = vmatpush1.msra.mxu0 0.0
        %1454 = vmatprep.subr.mxu0 0.0
        %1455 = vmatpush1.msra.mxu0 0.0
        %1456 = vmatprep.subr.mxu0 0.0
        %1457 = vmatpush1.msra.mxu0 0.0
        %1458 = vmatprep.subr.mxu0 0.0
        %1459 = vmatpush1.msra.mxu0 0.0
        %1460 = vmatprep.subr.mxu0 0.0
        %1461 = vmatpush1.msra.mxu0 0.0
        %1462 = vmatprep.subr.mxu0 0.0
        %1463 = vmatpush1.msra.mxu0 0.0
        %1464 = vmatprep.subr.mxu0 0.0
        %1465 = vmatpush1.msra.mxu0 0.0
        %1466 = vmatprep.subr.mxu0 0.0
        %1467 = vmatpush1.msra.mxu0 0.0
        %1468 = vmatprep.subr.mxu0 %v999
        %1469 = vmatpush1.msra.mxu0 %v998
        %1470 = vmatprep.subr.mxu0 %v995
        %1471 = vmatpush1.msra.mxu0 %v994
        %1472 = vmatprep.subr.mxu0 0.0
        %1473 = vmatpush2.msra.mxu0 0.0
        %1474 = vmatprep.subr.mxu0 0.0
        %1475 = vmatpush2.msra.mxu0 0.0
        %1476 = vmatprep.subr.mxu0 0.0
        %1477 = vmatpush2.msra.mxu0 0.0
        %1478 = vmatprep.subr.mxu0 0.0
        %1479 = vmatpush2.msra.mxu0 0.0
        %1480 = vmatprep.subr.mxu0 0.0
        %1481 = vmatpush2.msra.mxu0 0.0
        %1482 = vmatprep.subr.mxu0 0.0
        %1483 = vmatpush2.msra.mxu0 0.0
        %1484 = vmatprep.subr.mxu0 0.0
        %1485 = vmatpush2.msra.mxu0 0.0
        %1486 = vmatprep.subr.mxu0 0.0
        %1487 = vmatpush2.msra.mxu0 0.0
        %1488 = vmatprep.subr.mxu0 0.0
        %1489 = vmatpush2.msra.mxu0 0.0
        %1490 = vmatprep.subr.mxu0 0.0
        %1491 = vmatpush2.msra.mxu0 0.0
        %1492 = vmatprep.subr.mxu0 0.0
        %1493 = vmatpush2.msra.mxu0 0.0
        %1494 = vmatprep.subr.mxu0 0.0
        %1495 = vmatpush2.msra.mxu0 0.0
        %1496 = vmatprep.subr.mxu0 0.0
        %1497 = vmatpush2.msra.mxu0 0.0
        %1498 = vmatprep.subr.mxu0 0.0
        %1499 = vmatpush2.msra.mxu0 0.0
        %1500 = vmatprep.subr.mxu0 0.0
        %1501 = vmatpush2.msra.mxu0 0.0
        %1502 = vmatprep.subr.mxu0 0.0
        %1503 = vmatpush2.msra.mxu0 0.0
        %1504 = vmatprep.mubr.f32.mxu0 0.0
        %1505 = vmatmul.mubr.f32.gmra.mxu0 %v1438
        %v1506 = vpop.f32.mrf.mxu0
        %v1507 = vadd.f32 0.0, %v1506
        %v1508 = vpop.f32.mrf.mxu0
        %v1509 = vadd.f32 0.0, %v1508
        %1510 = vdwg.mxu0
        %1511 = vmatprep.subr.mxu0 0.0
        %1512 = vmatpush1.msra.mxu0 0.0
        %1513 = vmatprep.subr.mxu0 0.0
        %1514 = vmatpush1.msra.mxu0 0.0
        %1515 = vmatprep.subr.mxu0 0.0
        %1516 = vmatpush1.msra.mxu0 0.0
        %1517 = vmatprep.subr.mxu0 0.0
        %1518 = vmatpush1.msra.mxu0 0.0
        %1519 = vmatprep.subr.mxu0 0.0
        %1520 = vmatpush1.msra.mxu0 0.0
        %1521 = vmatprep.subr.mxu0 0.0
        %1522 = vmatpush1.msra.mxu0 0.0
        %1523 = vmatprep.subr.mxu0 0.0
        %1524 = vmatpush1.msra.mxu0 0.0
        %1525 = vmatprep.subr.mxu0 0.0
        %1526 = vmatpush1.msra.mxu0 0.0
        %1527 = vmatprep.subr.mxu0 0.0
        %1528 = vmatpush1.msra.mxu0 0.0
        %1529 = vmatprep.subr.mxu0 0.0
        %1530 = vmatpush1.msra.mxu0 0.0
        %1531 = vmatprep.subr.mxu0 0.0
        %1532 = vmatpush1.msra.mxu0 0.0
        %1533 = vmatprep.subr.mxu0 0.0
        %1534 = vmatpush1.msra.mxu0 0.0
        %1535 = vmatprep.subr.mxu0 0.0
        %1536 = vmatpush1.msra.mxu0 0.0
        %1537 = vmatprep.subr.mxu0 0.0
        %1538 = vmatpush1.msra.mxu0 0.0
        %1539 = vmatprep.subr.mxu0 %v1001
        %1540 = vmatpush1.msra.mxu0 %v1000
        %1541 = vmatprep.subr.mxu0 %v997
        %1542 = vmatpush1.msra.mxu0 %v996
        %1543 = vmatprep.subr.mxu0 0.0
        %1544 = vmatpush2.msra.mxu0 0.0
        %1545 = vmatprep.subr.mxu0 0.0
        %1546 = vmatpush2.msra.mxu0 0.0
        %1547 = vmatprep.subr.mxu0 0.0
        %1548 = vmatpush2.msra.mxu0 0.0
        %1549 = vmatprep.subr.mxu0 0.0
        %1550 = vmatpush2.msra.mxu0 0.0
        %1551 = vmatprep.subr.mxu0 0.0
        %1552 = vmatpush2.msra.mxu0 0.0
        %1553 = vmatprep.subr.mxu0 0.0
        %1554 = vmatpush2.msra.mxu0 0.0
        %1555 = vmatprep.subr.mxu0 0.0
        %1556 = vmatpush2.msra.mxu0 0.0
        %1557 = vmatprep.subr.mxu0 0.0
        %1558 = vmatpush2.msra.mxu0 0.0
        %1559 = vmatprep.subr.mxu0 0.0
        %1560 = vmatpush2.msra.mxu0 0.0
        %1561 = vmatprep.subr.mxu0 0.0
        %1562 = vmatpush2.msra.mxu0 0.0
        %1563 = vmatprep.subr.mxu0 0.0
        %1564 = vmatpush2.msra.mxu0 0.0
        %1565 = vmatprep.subr.mxu0 0.0
        %1566 = vmatpush2.msra.mxu0 0.0
        %1567 = vmatprep.subr.mxu0 0.0
        %1568 = vmatpush2.msra.mxu0 0.0
        %1569 = vmatprep.subr.mxu0 0.0
        %1570 = vmatpush2.msra.mxu0 0.0
        %1571 = vmatprep.subr.mxu0 0.0
        %1572 = vmatpush2.msra.mxu0 0.0
        %1573 = vmatprep.subr.mxu0 0.0
        %1574 = vmatpush2.msra.mxu0 0.0
        %1575 = vmatprep.mubr.f32.mxu0 0.0
        %1576 = vmatmul.mubr.f32.gmra.mxu0 %v1438
        %v1577 = vpop.f32.mrf.mxu0
        %v1578 = vadd.f32 0.0, %v1577
        %v1579 = vpop.f32.mrf.mxu0
        %v1580 = vadd.f32 0.0, %v1579
        %1581 = vdwg.mxu0
        %v1582 = vmul.f32 %v1288, %v1507
        %v1583 = vmul.f32 %v1289, %v1509
        %v1584 = vmul.f32 %v1290, %v1578
        %v1585 = vmul.f32 %v1291, %v1580
        %1586 = vst [vmem:[%s305] sm:$0xff] %v1582
        %1587 = vst [vmem:[%s305 + $0x8] sm:$0xff] %v1583
        %1588 = vst [vmem:[%s305 + $0x10] sm:$0xff] %v1584
        %1589 = vst [vmem:[%s305 + $0x18] sm:$0xff] %v1585
        %s1590 = sand.u32 %s147, 1
        %s1591 = scalar_lea.sflag [#allocation4], %s1590
        %s1592 = sand.u32 %s147, 1
        %s1593 = smul.addr %s1592, 32
        %s1594 = scalar_lea.vmem [#allocation10], %s1593
        // Predicated region
        $region57: #{tpu_custom_call.1} parent=39 // pred_check
          %p1595 = pneg %p157
        $region58: #{tpu_custom_call.1} parent=39 // pred_check_branch
          %1597 = sbr.rel (%p1595) target = $region60
        $region59: #{tpu_custom_call.1} parent=39 // pred_region
          %s1598 = smul.u32 4, %s24
          %s1600 = ssub.s32 512, 512
          %1601 = vsyncadd %s1591, %s1600
          %s1602 = smul.addr %s1598, 128
          %s1603 = scalar_lea.hbm %s5, %s1602
          %s1605 = sshll.u32 %s1594, 4
          %s1606 = int_to_ptr.vmem [resolvable:$true] %s1605
          %1608 = dma.vmem_to_hbm [thread:$0]  %s1606, 512, %s1603, %s1591
        $region60: #{tpu_custom_call.1} parent=39 // pred_fallthru
          _
      $region40: #{tpu_custom_call.1} parent=5 // pred_fallthru
        _
      %p1609 = scmp.le.s32.totalorder 2, %s19
      // Predicated region
      $region61: #{tpu_custom_call.1} parent=5 // pred_check
        %p1610 = pneg %p1609
      $region62: #{tpu_custom_call.1} parent=5 // pred_check_branch
        %1612 = sbr.rel (%p1610) target = $region64
      $region63: #{tpu_custom_call.1} parent=5 // pred_region
        %s1613 = ssub.s32 %s19, 2
        // Predicated region
        $region65: #{tpu_custom_call.1} parent=63 // pred_check
          %p1614 = pneg %p163
        $region66: #{tpu_custom_call.1} parent=63 // pred_check_branch
          %1616 = sbr.rel (%p1614) target = $region68
        $region67: #{tpu_custom_call.1} parent=63 // pred_region
          %s1617 = sand.u32 %s148, 1
          %s1618 = scalar_lea.sflag [#allocation4], %s1617
          %s1619 = sand.u32 %s148, 1
          %s1620 = smul.addr %s1619, 32
          %s1621 = scalar_lea.vmem [#allocation10], %s1620
          %1622 = dma.done %s1618, 512
        $region68: #{tpu_custom_call.1} parent=63 // pred_fallthru
          _
      $region64: #{tpu_custom_call.1} parent=5 // pred_fallthru
        _
    $region6: #{tpu_custom_call.1} parent=1 // loop_footer
      %s23 = sadd.s32 1, %s19
    $region7: #{tpu_custom_call.1} parent=1 // loop_footer_branch
      %18 = sbr.rel target = $region3
    $region8: #{tpu_custom_call.1} parent=1 // loop_exit
      _
    %1623 = vsyncpa [#allocation3], 1
    %s1624 = scalar_lea.sflag [#allocation3], 1
    %1625 = vsyncpa %s1624, 1
    %1626 = vsyncpa [#allocation6], 1
    %s1627 = scalar_lea.sflag [#allocation6], 1
    %1628 = vsyncpa %s1627, 1
    %1629 = vsyncpa [#allocation9], 1
    %1630 = vsyncpa [#allocation4], 1
    %s1631 = scalar_lea.sflag [#allocation4], 1
    %1632 = vsyncpa %s1631, 1

</llo_original>
